<compile_context>
chip_gen: v5e
topology: v5e:2x2
jax: 0.10.0
libtpu: 0.0.40
codegen_flags: <defaults>
</compile_context>

<pallas_src>
import functools

import jax
import jax.numpy as jnp
from jax.experimental import pallas as pl
from jax.experimental.pallas import tpu as pltpu


def _round_up(x, m):
    return ((x + m - 1) // m) * m


def screen_classifier_kernel(*refs, n_x, compute_dtype):
    """refs = (x_0..x_{n_x-1}, w1_0..w1_{n_x-1}, c1, w2, c2, w3, c3, wo, bo, out)."""
    x_refs = refs[:n_x]
    w1_refs = refs[n_x:2 * n_x]
    c1_ref, w2_ref, c2_ref, w3_ref, c3_ref, wo_ref, bo_ref = refs[2 * n_x:2 * n_x + 7]
    o_ref = refs[2 * n_x + 7]

    # layer_1 (+ folded BN1) -> relu.  One K-aligned dot when inputs were fused,
    # two dots (no concat) when both embedding dims are large.
    o1 = c1_ref[...]
    for x_ref, w_ref in zip(x_refs, w1_refs):
        o1 = o1 + jnp.dot(x_ref[...], w_ref[...], preferred_element_type=jnp.float32)
    o1 = jnp.maximum(o1, 0.0)

    # layer_2 (+ folded BN2) -> relu -> dropout (eval: identity)
    o2 = jnp.dot(o1.astype(compute_dtype), w2_ref[...],
                 preferred_element_type=jnp.float32) + c2_ref[...]
    o2 = jnp.maximum(o2, 0.0)

    # layer_3 (+ folded BN3) -> relu -> dropout (eval: identity)
    o3 = jnp.dot(o2.astype(compute_dtype), w3_ref[...],
                 preferred_element_type=jnp.float32) + c3_ref[...]
    o3 = jnp.maximum(o3, 0.0)

    # layer_out (output width padded to a multiple of 128 -> unmasked lane-dense stores)
    o = jnp.dot(o3.astype(compute_dtype), wo_ref[...],
                preferred_element_type=jnp.float32) + bo_ref[...]
    o_ref[...] = o.astype(o_ref.dtype)


def screen_classifier_forward(text_emb, layout_emb, params, *,
                              compute_dtype=jnp.bfloat16, out_dtype=None,
                              tile_b=1024):
    """text_emb: (B, bert_size), layout_emb: (B, layout_size). Returns (B, output_size)."""
    eps = 1e-5
    B, d_text = text_emb.shape
    d_layout = layout_emb.shape[1]
    compute_dtype = jnp.dtype(compute_dtype)
    out_dtype = jnp.dtype(out_dtype) if out_dtype is not None else compute_dtype

    # ---- Fold Linear bias + eval-mode BatchNorm into weight/bias (plain JAX glue) ----
    def fold_layer(w, b, bn):
        gamma, beta, mean, var = bn
        s = gamma * jax.lax.rsqrt(var + eps)
        t = beta - mean * s
        return w * s[None, :], (b * s + t)[None, :]

    w1f, c1 = fold_layer(params["w1"], params["b1"], params["bn1"])
    w2f, c2 = fold_layer(params["w2"], params["b2"], params["bn2"])
    w3f, c3 = fold_layer(params["w3"], params["b3"], params["bn3"])
    wo, bo = params["wo"], params["bo"][None, :]

    # ---- Pad output width to a multiple of 128 (lane-dense stores) ----
    out_dim = wo.shape[1]
    out_pad = _round_up(out_dim, 128)
    if out_pad != out_dim:
        wo = jnp.pad(wo, ((0, 0), (0, out_pad - out_dim)))
        bo = jnp.pad(bo, ((0, 0), (0, out_pad - out_dim)))

    # ---- Layer-1 input strategy: fuse small embeddings, split only when both K >= 256 ----
    fuse = (d_text < 256) or (d_layout < 256)
    if fuse:
        xs = [jnp.concatenate([text_emb, layout_emb], axis=1)]
        w1s = [w1f]
    else:
        xs = [text_emb, layout_emb]
        w1s = [w1f[:d_text], w1f[d_text:]]

    # Zero-pad each K to a multiple of 128 (lane-dense loads, MXU-aligned K).
    xs_p, w1s_p, d_ins = [], [], []
    for x, w in zip(xs, w1s):
        k = x.shape[1]
        kp = _round_up(k, 128)
        if kp != k:
            x = jnp.pad(x, ((0, 0), (0, kp - k)))
            w = jnp.pad(w, ((0, kp - k), (0, 0)))
        xs_p.append(x)
        w1s_p.append(w)
        d_ins.append(kp)

    # ---- Batch tiling: sublane-aligned tiles; >=2 tiles when possible (v7x megacore) ----
    sub = 8 * max(1, 4 // compute_dtype.itemsize)      # 8 for f32, 16 for bf16
    if B <= tile_b:
        tb = max(sub, _round_up(pl.cdiv(B, 2), sub))    # give both TCs work on v7x
        tb = min(tb, _round_up(B, sub))
    else:
        tb = min(_round_up(tile_b, sub), _round_up(B, sub))
    b_pad = _round_up(B, tb)
    if b_pad != B:
        xs_p = [jnp.pad(x, ((0, b_pad - B), (0, 0))) for x in xs_p]
    grid = (b_pad // tb,)

    # ---- dtype plumbing: matmul operands in compute_dtype, accumulate/epilogue in f32 ----
    xs_p = [x.astype(compute_dtype) for x in xs_p]
    w1s_p = [w.astype(compute_dtype) for w in w1s_p]
    w2c, w3c, woc = (a.astype(compute_dtype) for a in (w2f, w3f, wo))
    c1, c2, c3, bo = (a.astype(jnp.float32) for a in (c1, c2, c3, bo))

    weights = tuple(w1s_p) + (c1, w2c, c2, w3c, c3, woc, bo)

    def tiled(shape):      # activation / output tiles, blocked over the batch axis
        return pl.BlockSpec(shape, lambda i: (i, 0))

    def resident(shape):   # weights & biases: single block, resident across batch tiles
        return pl.BlockSpec(shape, lambda i: (0,) * len(shape))

    in_specs = [tiled((tb, k)) for k in d_ins] + [resident(a.shape) for a in weights]

    # VMEM budget: (double-buffered) resident weights + activation/output tiles, 2x slack.
    w_bytes = sum(int(a.size) * a.dtype.itemsize for a in weights)
    act_bytes = 2 * tb * sum(d_ins) * compute_dtype.itemsize
    out_bytes = 2 * tb * out_pad * out_dtype.itemsize
    vmem_limit = int(min(64 << 20, max(16 << 20, 2 * (2 * w_bytes + act_bytes + out_bytes))))

    kernel = functools.partial(screen_classifier_kernel,
                               n_x=len(xs_p), compute_dtype=compute_dtype)

    out = pl.pallas_call(
        kernel,
        out_shape=jax.ShapeDtypeStruct((b_pad, out_pad), out_dtype),
        grid=grid,
        in_specs=in_specs,
        out_specs=tiled((tb, out_pad)),
        compiler_params=pltpu.CompilerParams(
            dimension_semantics=("parallel",),  # shard batch tiles across v7x's 2 TCs
            vmem_limit_bytes=vmem_limit,
        ),
    )(*xs_p, *weights)

    return out[:B, :out_dim]


def init_params(key, bert_size, layout_size, output_size=34):
    d_in = bert_size + layout_size
    dims = [(d_in, 512), (512, 256), (256, 128), (128, output_size)]
    names = ["1", "2", "3", "o"]
    params = {}
    keys = jax.random.split(key, 24)
    k_i = 0
    for (din, dout), nm in zip(dims, names):
        params[f"w{nm}"] = (jax.random.normal(keys[k_i], (din, dout), jnp.float32)
                            * (1.0 / jnp.sqrt(din)))
        k_i += 1
        params[f"b{nm}"] = jax.random.normal(keys[k_i], (dout,), jnp.float32) * 0.01
        k_i += 1
    # BatchNorm1d params (gamma, beta, running_mean, running_var) for the 3 BN layers.
    for nm, c in (("bn1", 512), ("bn2", 256), ("bn3", 128)):
        gamma = 1.0 + 0.1 * jax.random.normal(keys[k_i], (c,), jnp.float32); k_i += 1
        beta = 0.05 * jax.random.normal(keys[k_i], (c,), jnp.float32); k_i += 1
        mean = 0.1 * jax.random.normal(keys[k_i], (c,), jnp.float32); k_i += 1
        var = jnp.abs(1.0 + 0.1 * jax.random.normal(keys[k_i], (c,), jnp.float32)); k_i += 1
        params[nm] = (gamma, beta, mean, var)
    return params


def reference_forward(text_emb, layout_emb, params):
    """Pure-JAX reference mirroring the PyTorch eval-mode forward."""
    eps = 1e-5
    x = jnp.concatenate([text_emb, layout_emb], axis=1).astype(jnp.float32)

    def block(x, w, b, bn):
        gamma, beta, mean, var = bn
        o = x @ w + b
        o = (o - mean) / jnp.sqrt(var + eps) * gamma + beta
        return jnp.maximum(o, 0.0)

    o1 = block(x, params["w1"], params["b1"], params["bn1"])
    o2 = block(o1, params["w2"], params["b2"], params["bn2"])
    o3 = block(o2, params["w3"], params["b3"], params["bn3"])
    return o3 @ params["wo"] + params["bo"]


if __name__ == "__main__":
    # Small shapes consistent with the module: shrink bert/layout input dims,
    # keep the hardcoded hidden dims 512/256/128 and output_size=34.
    B = 20
    output_size = 34
    key = jax.random.PRNGKey(0)
    k_p, k_t, k_l, k_p2, k_t2, k_l2 = jax.random.split(key, 6)

    # --- Config 1: small embedding dims (64 + 192) -> fused, 128-padded layer-1 input ---
    bert_size, layout_size = 64, 192
    params = init_params(k_p, bert_size, layout_size, output_size)
    text_emb = jax.random.normal(k_t, (B, bert_size), jnp.float32)
    layout_emb = jax.random.normal(k_l, (B, layout_size), jnp.float32)
    ref = reference_forward(text_emb, layout_emb, params)

    # Default inference path: bf16 matmuls + bf16 output, batch split into 2 tiles.
    out_bf16 = screen_classifier_forward(text_emb, layout_emb, params)
    out_bf16 = jax.block_until_ready(out_bf16)
    assert out_bf16.shape == (B, output_size)
    assert jnp.allclose(out_bf16.astype(jnp.float32), ref, atol=0.15, rtol=0.15), \
        "bf16 mismatch vs reference"

    # f32 path (f32 output) with tight tolerance; small tile exercises padding/grid logic.
    out_f32 = screen_classifier_forward(text_emb, layout_emb, params,
                                        compute_dtype=jnp.float32,
                                        out_dtype=jnp.float32, tile_b=8)
    out_f32 = jax.block_until_ready(out_f32)
    assert out_f32.shape == (B, output_size)
    assert jnp.allclose(out_f32, ref, atol=1e-4, rtol=1e-4), "f32 mismatch vs reference"

    # --- Config 2: both embedding dims >= 256 -> split two-dot layer-1 path (no concat) ---
    bert_size2, layout_size2 = 256, 256
    params2 = init_params(k_p2, bert_size2, layout_size2, output_size)
    text_emb2 = jax.random.normal(k_t2, (B, bert_size2), jnp.float32)
    layout_emb2 = jax.random.normal(k_l2, (B, layout_size2), jnp.float32)
    ref2 = reference_forward(text_emb2, layout_emb2, params2)

    out2 = screen_classifier_forward(text_emb2, layout_emb2, params2,
                                     compute_dtype=jnp.float32,
                                     out_dtype=jnp.float32)
    out2 = jax.block_until_ready(out2)
    assert out2.shape == (B, output_size)
    assert jnp.allclose(out2, ref2, atol=1e-4, rtol=1e-4), "split-path mismatch vs reference"

    print("KERNEL_OK")
</pallas_src>

<mosaic_0001>
module attributes {stable_mosaic.version = 11 : i64} {
  func.func @screen_classifier_kernel(%arg0: i32, %arg1: memref<16x256xbf16, #tpu.memory_space<vmem>>, %arg2: memref<256x512xbf16, #tpu.memory_space<vmem>>, %arg3: memref<1x512xf32, #tpu.memory_space<vmem>>, %arg4: memref<512x256xbf16, #tpu.memory_space<vmem>>, %arg5: memref<1x256xf32, #tpu.memory_space<vmem>>, %arg6: memref<256x128xbf16, #tpu.memory_space<vmem>>, %arg7: memref<1x128xf32, #tpu.memory_space<vmem>>, %arg8: memref<128x128xbf16, #tpu.memory_space<vmem>>, %arg9: memref<1x128xf32, #tpu.memory_space<vmem>>, %arg10: memref<16x128xbf16, #tpu.memory_space<vmem>>) attributes {dimension_semantics = [#tpu.dimension_semantics<parallel>], iteration_bounds = array<i64: 2>, scalar_prefetch = 0 : i64, scratch_operands = 0 : i64, tpu.core_type = #tpu.core_type<tc>, window_params = [{transform_indices = @transform_0, window_bounds = array<i64: 16, 256>}, {pipeline_mode = #tpu.pipeline_mode<synchronous>, transform_indices = @transform_1, window_bounds = array<i64: 256, 512>}, {pipeline_mode = #tpu.pipeline_mode<synchronous>, transform_indices = @transform_2, window_bounds = array<i64: 1, 512>}, {pipeline_mode = #tpu.pipeline_mode<synchronous>, transform_indices = @transform_3, window_bounds = array<i64: 512, 256>}, {pipeline_mode = #tpu.pipeline_mode<synchronous>, transform_indices = @transform_4, window_bounds = array<i64: 1, 256>}, {pipeline_mode = #tpu.pipeline_mode<synchronous>, transform_indices = @transform_5, window_bounds = array<i64: 256, 128>}, {pipeline_mode = #tpu.pipeline_mode<synchronous>, transform_indices = @transform_6, window_bounds = array<i64: 1, 128>}, {pipeline_mode = #tpu.pipeline_mode<synchronous>, transform_indices = @transform_7, window_bounds = array<i64: 128, 128>}, {pipeline_mode = #tpu.pipeline_mode<synchronous>, transform_indices = @transform_8, window_bounds = array<i64: 1, 128>}, {transform_indices = @transform_9, window_bounds = array<i64: 16, 128>}]} {
    %c0 = arith.constant 0 : index
    %c0_0 = arith.constant 0 : index
    %0 = vector.load %arg3[%c0, %c0_0] : memref<1x512xf32, #tpu.memory_space<vmem>>, vector<1x512xf32>
    %c0_1 = arith.constant 0 : index
    %c0_2 = arith.constant 0 : index
    %1 = vector.load %arg1[%c0_1, %c0_2] : memref<16x256xbf16, #tpu.memory_space<vmem>>, vector<16x256xbf16>
    %c0_3 = arith.constant 0 : index
    %c0_4 = arith.constant 0 : index
    %2 = vector.load %arg2[%c0_3, %c0_4] : memref<256x512xbf16, #tpu.memory_space<vmem>>, vector<256x512xbf16>
    %cst = arith.constant dense<0.000000e+00> : vector<16x512xf32>
    %3 = tpu.matmul %1, %2, %cst {dimension_numbers = #tpu.dot_dimension_numbers<[1], [0], [0], [1], [0, 0, 1, 1], [], []>} : vector<16x256xbf16>, vector<256x512xbf16>, vector<16x512xf32> -> vector<16x512xf32>
    %4 = vector.broadcast %0 : vector<1x512xf32> to vector<16x512xf32>
    %5 = arith.addf %4, %3 : vector<16x512xf32>
    %cst_5 = arith.constant 0.000000e+00 : f32
    %6 = vector.broadcast %cst_5 : f32 to vector<16x512xf32>
    %7 = arith.maximumf %5, %6 : vector<16x512xf32>
    %8 = arith.truncf %7 : vector<16x512xf32> to vector<16x512xbf16>
    %c0_6 = arith.constant 0 : index
    %c0_7 = arith.constant 0 : index
    %9 = vector.load %arg4[%c0_6, %c0_7] : memref<512x256xbf16, #tpu.memory_space<vmem>>, vector<512x256xbf16>
    %cst_8 = arith.constant dense<0.000000e+00> : vector<16x256xf32>
    %10 = tpu.matmul %8, %9, %cst_8 {dimension_numbers = #tpu.dot_dimension_numbers<[1], [0], [0], [1], [0, 0, 1, 1], [], []>} : vector<16x512xbf16>, vector<512x256xbf16>, vector<16x256xf32> -> vector<16x256xf32>
    %c0_9 = arith.constant 0 : index
    %c0_10 = arith.constant 0 : index
    %11 = vector.load %arg5[%c0_9, %c0_10] : memref<1x256xf32, #tpu.memory_space<vmem>>, vector<1x256xf32>
    %12 = vector.broadcast %11 : vector<1x256xf32> to vector<16x256xf32>
    %13 = arith.addf %10, %12 : vector<16x256xf32>
    %cst_11 = arith.constant 0.000000e+00 : f32
    %14 = vector.broadcast %cst_11 : f32 to vector<16x256xf32>
    %15 = arith.maximumf %13, %14 : vector<16x256xf32>
    %16 = arith.truncf %15 : vector<16x256xf32> to vector<16x256xbf16>
    %c0_12 = arith.constant 0 : index
    %c0_13 = arith.constant 0 : index
    %17 = vector.load %arg6[%c0_12, %c0_13] : memref<256x128xbf16, #tpu.memory_space<vmem>>, vector<256x128xbf16>
    %cst_14 = arith.constant dense<0.000000e+00> : vector<16x128xf32>
    %18 = tpu.matmul %16, %17, %cst_14 {dimension_numbers = #tpu.dot_dimension_numbers<[1], [0], [0], [1], [0, 0, 1, 1], [], []>} : vector<16x256xbf16>, vector<256x128xbf16>, vector<16x128xf32> -> vector<16x128xf32>
    %c0_15 = arith.constant 0 : index
    %c0_16 = arith.constant 0 : index
    %19 = vector.load %arg7[%c0_15, %c0_16] : memref<1x128xf32, #tpu.memory_space<vmem>>, vector<1x128xf32>
    %20 = vector.broadcast %19 : vector<1x128xf32> to vector<16x128xf32>
    %21 = arith.addf %18, %20 : vector<16x128xf32>
    %cst_17 = arith.constant 0.000000e+00 : f32
    %22 = vector.broadcast %cst_17 : f32 to vector<16x128xf32>
    %23 = arith.maximumf %21, %22 : vector<16x128xf32>
    %24 = arith.truncf %23 : vector<16x128xf32> to vector<16x128xbf16>
    %c0_18 = arith.constant 0 : index
    %c0_19 = arith.constant 0 : index
    %25 = vector.load %arg8[%c0_18, %c0_19] : memref<128x128xbf16, #tpu.memory_space<vmem>>, vector<128x128xbf16>
    %cst_20 = arith.constant dense<0.000000e+00> : vector<16x128xf32>
    %26 = tpu.matmul %24, %25, %cst_20 {dimension_numbers = #tpu.dot_dimension_numbers<[1], [0], [0], [1], [0, 0, 1, 1], [], []>} : vector<16x128xbf16>, vector<128x128xbf16>, vector<16x128xf32> -> vector<16x128xf32>
    %c0_21 = arith.constant 0 : index
    %c0_22 = arith.constant 0 : index
    %27 = vector.load %arg9[%c0_21, %c0_22] : memref<1x128xf32, #tpu.memory_space<vmem>>, vector<1x128xf32>
    %28 = vector.broadcast %27 : vector<1x128xf32> to vector<16x128xf32>
    %29 = arith.addf %26, %28 : vector<16x128xf32>
    %30 = arith.truncf %29 : vector<16x128xf32> to vector<16x128xbf16>
    %c0_23 = arith.constant 0 : index
    %c0_24 = arith.constant 0 : index
    %31 = vector.load %arg10[%c0_23, %c0_24] : memref<16x128xbf16, #tpu.memory_space<vmem>>, vector<16x128xbf16>
    tpu.vector_store %arg10[%c0_23, %c0_24], %30 {strides = array<i32>} : memref<16x128xbf16, #tpu.memory_space<vmem>>, vector<16x128xbf16>,
    return
  }
  func.func @transform_0(%arg0: i32) -> (i32, i32) {
    %c0_i32 = arith.constant 0 : i32
    %c0_i32_0 = arith.constant 0 : i32
    return %arg0, %c0_i32 : i32, i32
  }
  func.func @transform_1(%arg0: i32) -> (i32, i32) {
    %c0_i32 = arith.constant 0 : i32
    %c0_i32_0 = arith.constant 0 : i32
    %c0_i32_1 = arith.constant 0 : i32
    return %c0_i32, %c0_i32_0 : i32, i32
  }
  func.func @transform_2(%arg0: i32) -> (i32, i32) {
    %c0_i32 = arith.constant 0 : i32
    %c0_i32_0 = arith.constant 0 : i32
    %c0_i32_1 = arith.constant 0 : i32
    return %c0_i32, %c0_i32_0 : i32, i32
  }
  func.func @transform_3(%arg0: i32) -> (i32, i32) {
    %c0_i32 = arith.constant 0 : i32
    %c0_i32_0 = arith.constant 0 : i32
    %c0_i32_1 = arith.constant 0 : i32
    return %c0_i32, %c0_i32_0 : i32, i32
  }
  func.func @transform_4(%arg0: i32) -> (i32, i32) {
    %c0_i32 = arith.constant 0 : i32
    %c0_i32_0 = arith.constant 0 : i32
    %c0_i32_1 = arith.constant 0 : i32
    return %c0_i32, %c0_i32_0 : i32, i32
  }
  func.func @transform_5(%arg0: i32) -> (i32, i32) {
    %c0_i32 = arith.constant 0 : i32
    %c0_i32_0 = arith.constant 0 : i32
    %c0_i32_1 = arith.constant 0 : i32
    return %c0_i32, %c0_i32_0 : i32, i32
  }
  func.func @transform_6(%arg0: i32) -> (i32, i32) {
    %c0_i32 = arith.constant 0 : i32
    %c0_i32_0 = arith.constant 0 : i32
    %c0_i32_1 = arith.constant 0 : i32
    return %c0_i32, %c0_i32_0 : i32, i32
  }
  func.func @transform_7(%arg0: i32) -> (i32, i32) {
    %c0_i32 = arith.constant 0 : i32
    %c0_i32_0 = arith.constant 0 : i32
    %c0_i32_1 = arith.constant 0 : i32
    return %c0_i32, %c0_i32_0 : i32, i32
  }
  func.func @transform_8(%arg0: i32) -> (i32, i32) {
    %c0_i32 = arith.constant 0 : i32
    %c0_i32_0 = arith.constant 0 : i32
    %c0_i32_1 = arith.constant 0 : i32
    return %c0_i32, %c0_i32_0 : i32, i32
  }
  func.func @transform_9(%arg0: i32) -> (i32, i32) {
    %c0_i32 = arith.constant 0 : i32
    %c0_i32_0 = arith.constant 0 : i32
    return %arg0, %c0_i32 : i32, i32
  }
}

</mosaic_0001>

<llo_original>
// kernel: tpu_custom_call.1
$region0: #{tpu_custom_call.1}
  #allocation0 [shape = 'u32[]', space=smem, size = 0x4, offset = 0x4, fixed_abs, tag = 'smem constant byte address 0x4 - core index']
  #allocation1 [shape = 'u32[72,128]{1,0:T(1,128)}', space=vmem, size = 0x9000, scoped, tag = 'internal scratch']
  %s0 = inlined_call_operand.hbm [shape: bf16[32,256], index: 0, kind: input, shape index: {}]
  %s1 = inlined_call_operand.hbm [shape: bf16[256,512], index: 1, kind: input, shape index: {}]
  %s2 = inlined_call_operand.hbm [shape: f32[1,512], index: 2, kind: input, shape index: {}]
  %s3 = inlined_call_operand.hbm [shape: bf16[512,256], index: 3, kind: input, shape index: {}]
  %s4 = inlined_call_operand.vmem [shape: f32[1,256], index: 4, kind: input, shape index: {}]
  %s5 = inlined_call_operand.hbm [shape: bf16[256,128], index: 5, kind: input, shape index: {}]
  %s6 = inlined_call_operand.vmem [shape: f32[1,128], index: 6, kind: input, shape index: {}]
  %s7 = inlined_call_operand.hbm [shape: bf16[128,128], index: 7, kind: input, shape index: {}]
  %s8 = inlined_call_operand.vmem [shape: f32[1,128], index: 8, kind: input, shape index: {}]
  %s9 = inlined_call_operand.hbm [shape: bf16[32,128], index: 9, kind: output, shape index: {}]
  %s10 = sld [smem:[#allocation0]]
  $region93: #{tpu_custom_call.1} parent=0
    _
  %s12 = ssub.s32 1, %s10
  %s13 = scalar_select 0, %s12, %s10
  $region1: #{tpu_custom_call.1} parent=0
    #allocation2 [shape = 'u8[16384]{0}', space=vmem, size = 0x4000, scoped, tag = 'input window, operand 0']
    #allocation3 [shape = 's32[2]{0}', space=sflag, size = 0x8, scoped, tag = 'scoped memory for tpu_custom_call.1']
    #allocation4 [shape = 's32[2]{0}', space=sflag, size = 0x8, scoped, tag = 'scoped memory for tpu_custom_call.1']
    #allocation5 [shape = 'u8[262144]{0}', space=vmem, size = 0x40000, scoped, tag = 'input window, operand 1, single buffered']
    #allocation6 [shape = 's32[1]{0}', space=sflag, size = 0x4, scoped, tag = 'scoped memory for tpu_custom_call.1']
    #allocation7 [shape = 'u8[2048]{0}', space=vmem, size = 0x800, scoped, tag = 'input window, operand 2, single buffered']
    #allocation8 [shape = 'u8[262144]{0}', space=vmem, size = 0x40000, scoped, tag = 'input window, operand 3, single buffered']
    #allocation9 [shape = 's32[1]{0}', space=sflag, size = 0x4, scoped, tag = 'scoped memory for tpu_custom_call.1']
    #allocation10 [shape = 'u8[65536]{0}', space=vmem, size = 0x10000, scoped, tag = 'input window, operand 5, single buffered']
    #allocation11 [shape = 'u8[32768]{0}', space=vmem, size = 0x8000, scoped, tag = 'input window, operand 7, single buffered']
    #allocation12 [shape = 's32[1]{0}', space=sflag, size = 0x4, scoped, tag = 'scoped memory for tpu_custom_call.1']
    #allocation13 [shape = 'u8[8192]{0}', space=vmem, size = 0x2000, scoped, tag = 'output window, operand 0']
    %14 = vsyncpa [#allocation3], 0
    %s15 = scalar_lea.sflag [#allocation3], 1
    %16 = vsyncpa %s15, 0
    %17 = vsyncpa [#allocation6], 0
    %18 = vsyncpa [#allocation9], 0
    %19 = vsyncpa [#allocation12], 0
    %20 = vsyncpa [#allocation4], 0
    %s21 = scalar_lea.sflag [#allocation4], 1
    %22 = vsyncpa %s21, 0
    loop: start=0, step=1, limit=4
    $region2: #{tpu_custom_call.1} parent=1 // loop_pre_header
      _
    $region3: #{tpu_custom_call.1} parent=1 // loop_header
      %s24 = sphi 0, %s28
      %p25 = scmp.ge.s32.totalorder %s24, 4
      %s34 = sphi 0, %s36
      %s37 = sphi 0, %s34
      %s38 = sphi 0, %s37
      %s54 = sphi 0, %s38
      %s58 = sphi 0, %s58
      %s60 = sphi 0, %s58
      %s61 = sphi 0, %s60
      %s75 = sphi 0, %s61
      %s79 = sphi 0, %s79
      %s81 = sphi 0, %s79
      %s82 = sphi 0, %s81
      %s96 = sphi 0, %s82
      %s100 = sphi 0, %s100
      %s102 = sphi 0, %s100
      %s103 = sphi 0, %s102
      %s117 = sphi 0, %s103
      %s121 = sphi 0, %s121
      %s123 = sphi 0, %s121
      %s124 = sphi 0, %s123
      %s138 = sphi 0, %s124
      %s142 = sphi 0, %s142
      %s144 = sphi 0, %s142
      %s145 = sphi 0, %s144
      %s159 = sphi 0, %s145
      %s163 = sphi 0, %s163
      %s165 = sphi 0, %s163
      %s166 = sphi 0, %s165
      %s180 = sphi 0, %s166
      %s184 = sphi 0, %s184
      %s186 = sphi 0, %s184
      %s187 = sphi 0, %s186
      %s201 = sphi 0, %s187
      %s205 = sphi 0, %s205
      %s207 = sphi 0, %s205
      %s208 = sphi 0, %s207
      %s222 = sphi 0, %s208
      %s228 = sphi 0, %s230
      %s231 = sphi 0, %s228
      %s232 = sphi 0, %s231
      %s248 = sphi 0, %s232
    $region4: #{tpu_custom_call.1} parent=1 // loop_header_branch
      %27 = sbr.rel (%p25) target = $region8
    $region5: #{tpu_custom_call.1} parent=1 // loop_body
      %s29 = ssub.s32 %s24, 1
      %s30 = ssub.s32 %s24, 2
      %s31 = sadd.s32 %s24, 1
      %s32 = ssub.s32 %s24, %s31
      %p33 = scmp.eq.s32.totalorder %s32, 0
      %s35 = sadd.s32 %s34, 1
      %s36 = scalar_select %p33, %s34, %s35
      %p39 = pneg %p33
      %p40 = scmp.eq.s32.totalorder %s24, 1
      %p41 = por %p39, %p40
      %p42 = scmp.ne.s32.totalorder %s34, %s37
      %p43 = scmp.eq.s32.totalorder %s24, 0
      %p44 = por %p42, %p43
      %p45 = scmp.ne.s32.totalorder %s34, %s37
      %p46 = scmp.eq.s32.totalorder %s29, 1
      %p47 = por %p45, %p46
      %p48 = scmp.ne.s32.totalorder %s37, %s38
      %p49 = scmp.eq.s32.totalorder %s29, 0
      %p50 = por %p48, %p49
      %p51 = scmp.ne.s32.totalorder %s37, %s38
      %p52 = scmp.eq.s32.totalorder %s30, 1
      %p53 = por %p51, %p52
      %p55 = scmp.ne.s32.totalorder %s38, %s54
      %p56 = scmp.eq.s32.totalorder %s30, 0
      %p57 = por %p55, %p56
      %s59 = sadd.s32 %s58, 1
      %p62 = scmp.eq.s32.totalorder %s24, 1
      %p63 = scmp.ne.s32.totalorder %s58, %s60
      %p64 = scmp.eq.s32.totalorder %s24, 0
      %p65 = por %p63, %p64
      %p66 = scmp.ne.s32.totalorder %s58, %s60
      %p67 = scmp.eq.s32.totalorder %s29, 1
      %p68 = por %p66, %p67
      %p69 = scmp.ne.s32.totalorder %s60, %s61
      %p70 = scmp.eq.s32.totalorder %s29, 0
      %p71 = por %p69, %p70
      %p72 = scmp.ne.s32.totalorder %s60, %s61
      %p73 = scmp.eq.s32.totalorder %s30, 1
      %p74 = por %p72, %p73
      %p76 = scmp.ne.s32.totalorder %s61, %s75
      %p77 = scmp.eq.s32.totalorder %s30, 0
      %p78 = por %p76, %p77
      %s80 = sadd.s32 %s79, 1
      %p83 = scmp.eq.s32.totalorder %s24, 1
      %p84 = scmp.ne.s32.totalorder %s79, %s81
      %p85 = scmp.eq.s32.totalorder %s24, 0
      %p86 = por %p84, %p85
      %p87 = scmp.ne.s32.totalorder %s79, %s81
      %p88 = scmp.eq.s32.totalorder %s29, 1
      %p89 = por %p87, %p88
      %p90 = scmp.ne.s32.totalorder %s81, %s82
      %p91 = scmp.eq.s32.totalorder %s29, 0
      %p92 = por %p90, %p91
      %p93 = scmp.ne.s32.totalorder %s81, %s82
      %p94 = scmp.eq.s32.totalorder %s30, 1
      %p95 = por %p93, %p94
      %p97 = scmp.ne.s32.totalorder %s82, %s96
      %p98 = scmp.eq.s32.totalorder %s30, 0
      %p99 = por %p97, %p98
      %s101 = sadd.s32 %s100, 1
      %p104 = scmp.eq.s32.totalorder %s24, 1
      %p105 = scmp.ne.s32.totalorder %s100, %s102
      %p106 = scmp.eq.s32.totalorder %s24, 0
      %p107 = por %p105, %p106
      %p108 = scmp.ne.s32.totalorder %s100, %s102
      %p109 = scmp.eq.s32.totalorder %s29, 1
      %p110 = por %p108, %p109
      %p111 = scmp.ne.s32.totalorder %s102, %s103
      %p112 = scmp.eq.s32.totalorder %s29, 0
      %p113 = por %p111, %p112
      %p114 = scmp.ne.s32.totalorder %s102, %s103
      %p115 = scmp.eq.s32.totalorder %s30, 1
      %p116 = por %p114, %p115
      %p118 = scmp.ne.s32.totalorder %s103, %s117
      %p119 = scmp.eq.s32.totalorder %s30, 0
      %p120 = por %p118, %p119
      %s122 = sadd.s32 %s121, 1
      %p125 = scmp.eq.s32.totalorder %s24, 1
      %p126 = scmp.ne.s32.totalorder %s121, %s123
      %p127 = scmp.eq.s32.totalorder %s24, 0
      %p128 = por %p126, %p127
      %p129 = scmp.ne.s32.totalorder %s121, %s123
      %p130 = scmp.eq.s32.totalorder %s29, 1
      %p131 = por %p129, %p130
      %p132 = scmp.ne.s32.totalorder %s123, %s124
      %p133 = scmp.eq.s32.totalorder %s29, 0
      %p134 = por %p132, %p133
      %p135 = scmp.ne.s32.totalorder %s123, %s124
      %p136 = scmp.eq.s32.totalorder %s30, 1
      %p137 = por %p135, %p136
      %p139 = scmp.ne.s32.totalorder %s124, %s138
      %p140 = scmp.eq.s32.totalorder %s30, 0
      %p141 = por %p139, %p140
      %s143 = sadd.s32 %s142, 1
      %p146 = scmp.eq.s32.totalorder %s24, 1
      %p147 = scmp.ne.s32.totalorder %s142, %s144
      %p148 = scmp.eq.s32.totalorder %s24, 0
      %p149 = por %p147, %p148
      %p150 = scmp.ne.s32.totalorder %s142, %s144
      %p151 = scmp.eq.s32.totalorder %s29, 1
      %p152 = por %p150, %p151
      %p153 = scmp.ne.s32.totalorder %s144, %s145
      %p154 = scmp.eq.s32.totalorder %s29, 0
      %p155 = por %p153, %p154
      %p156 = scmp.ne.s32.totalorder %s144, %s145
      %p157 = scmp.eq.s32.totalorder %s30, 1
      %p158 = por %p156, %p157
      %p160 = scmp.ne.s32.totalorder %s145, %s159
      %p161 = scmp.eq.s32.totalorder %s30, 0
      %p162 = por %p160, %p161
      %s164 = sadd.s32 %s163, 1
      %p167 = scmp.eq.s32.totalorder %s24, 1
      %p168 = scmp.ne.s32.totalorder %s163, %s165
      %p169 = scmp.eq.s32.totalorder %s24, 0
      %p170 = por %p168, %p169
      %p171 = scmp.ne.s32.totalorder %s163, %s165
      %p172 = scmp.eq.s32.totalorder %s29, 1
      %p173 = por %p171, %p172
      %p174 = scmp.ne.s32.totalorder %s165, %s166
      %p175 = scmp.eq.s32.totalorder %s29, 0
      %p176 = por %p174, %p175
      %p177 = scmp.ne.s32.totalorder %s165, %s166
      %p178 = scmp.eq.s32.totalorder %s30, 1
      %p179 = por %p177, %p178
      %p181 = scmp.ne.s32.totalorder %s166, %s180
      %p182 = scmp.eq.s32.totalorder %s30, 0
      %p183 = por %p181, %p182
      %s185 = sadd.s32 %s184, 1
      %p188 = scmp.eq.s32.totalorder %s24, 1
      %p189 = scmp.ne.s32.totalorder %s184, %s186
      %p190 = scmp.eq.s32.totalorder %s24, 0
      %p191 = por %p189, %p190
      %p192 = scmp.ne.s32.totalorder %s184, %s186
      %p193 = scmp.eq.s32.totalorder %s29, 1
      %p194 = por %p192, %p193
      %p195 = scmp.ne.s32.totalorder %s186, %s187
      %p196 = scmp.eq.s32.totalorder %s29, 0
      %p197 = por %p195, %p196
      %p198 = scmp.ne.s32.totalorder %s186, %s187
      %p199 = scmp.eq.s32.totalorder %s30, 1
      %p200 = por %p198, %p199
      %p202 = scmp.ne.s32.totalorder %s187, %s201
      %p203 = scmp.eq.s32.totalorder %s30, 0
      %p204 = por %p202, %p203
      %s206 = sadd.s32 %s205, 1
      %p209 = scmp.eq.s32.totalorder %s24, 1
      %p210 = scmp.ne.s32.totalorder %s205, %s207
      %p211 = scmp.eq.s32.totalorder %s24, 0
      %p212 = por %p210, %p211
      %p213 = scmp.ne.s32.totalorder %s205, %s207
      %p214 = scmp.eq.s32.totalorder %s29, 1
      %p215 = por %p213, %p214
      %p216 = scmp.ne.s32.totalorder %s207, %s208
      %p217 = scmp.eq.s32.totalorder %s29, 0
      %p218 = por %p216, %p217
      %p219 = scmp.ne.s32.totalorder %s207, %s208
      %p220 = scmp.eq.s32.totalorder %s30, 1
      %p221 = por %p219, %p220
      %p223 = scmp.ne.s32.totalorder %s208, %s222
      %p224 = scmp.eq.s32.totalorder %s30, 0
      %p225 = por %p223, %p224
      %s226 = ssub.s32 %s24, %s31
      %p227 = scmp.eq.s32.totalorder %s226, 0
      %s229 = sadd.s32 %s228, 1
      %s230 = scalar_select %p227, %s228, %s229
      %p233 = pneg %p227
      %p234 = scmp.eq.s32.totalorder %s24, 1
      %p235 = por %p233, %p234
      %p236 = scmp.ne.s32.totalorder %s228, %s231
      %p237 = scmp.eq.s32.totalorder %s24, 0
      %p238 = por %p236, %p237
      %p239 = scmp.ne.s32.totalorder %s228, %s231
      %p240 = scmp.eq.s32.totalorder %s29, 1
      %p241 = por %p239, %p240
      %p242 = scmp.ne.s32.totalorder %s231, %s232
      %p243 = scmp.eq.s32.totalorder %s29, 0
      %p244 = por %p242, %p243
      %p245 = scmp.ne.s32.totalorder %s231, %s232
      %p246 = scmp.eq.s32.totalorder %s30, 1
      %p247 = por %p245, %p246
      %p249 = scmp.ne.s32.totalorder %s232, %s248
      %p250 = scmp.eq.s32.totalorder %s30, 0
      %p251 = por %p249, %p250
      %p252 = scmp.le.s32.totalorder 1, %s24
      %p253 = scmp.lt.s32.totalorder %s24, 3
      %p254 = pnand %p252, %p253
      %p255 = pneg %p254
      // Predicated region
      $region9: #{tpu_custom_call.1} parent=5 // pred_check
        _
      $region10: #{tpu_custom_call.1} parent=5 // pred_check_branch
        %257 = sbr.rel (%p254) target = $region12
      $region11: #{tpu_custom_call.1} parent=5 // pred_region
        %s258 = ssub.s32 %s24, 1
        // Predicated region
        $region13: #{tpu_custom_call.1} parent=11 // pred_check
          %p259 = pneg %p71
        $region14: #{tpu_custom_call.1} parent=11 // pred_check_branch
          %261 = sbr.rel (%p259) target = $region16
        $region15: #{tpu_custom_call.1} parent=11 // pred_region
          %263 = vsyncadd [#allocation6], 0
          %s264 = sshll.u32 %s1, 4
          %s265 = int_to_ptr.hbm [resolvable:$true] %s264
          %s266 = sshll.u32 [#allocation5], 4
          %s267 = int_to_ptr.vmem [resolvable:$true] %s266
          %272 = dma.hbm_to_vmem [thread:$0]  %s265, 8192, %s267, [#allocation6], 256, 256, 16
        $region16: #{tpu_custom_call.1} parent=11 // pred_fallthru
          _
        // Predicated region
        $region17: #{tpu_custom_call.1} parent=11 // pred_check
          %p273 = pneg %p92
        $region18: #{tpu_custom_call.1} parent=11 // pred_check_branch
          %275 = sbr.rel (%p273) target = $region20
        $region19: #{tpu_custom_call.1} parent=11 // pred_region
          %277 = vsyncadd [#allocation6], 0
          %s279 = sshll.u32 %s2, 4
          %s280 = int_to_ptr.hbm [resolvable:$true] %s279
          %s281 = sshll.u32 [#allocation7], 4
          %s282 = int_to_ptr.vmem [resolvable:$true] %s281
          %284 = dma.hbm_to_vmem [thread:$0]  %s280, 64, %s282, [#allocation6]
        $region20: #{tpu_custom_call.1} parent=11 // pred_fallthru
          _
        // Predicated region
        $region21: #{tpu_custom_call.1} parent=11 // pred_check
          %p285 = pneg %p113
        $region22: #{tpu_custom_call.1} parent=11 // pred_check_branch
          %287 = sbr.rel (%p285) target = $region24
        $region23: #{tpu_custom_call.1} parent=11 // pred_region
          %289 = vsyncadd [#allocation9], 0
          %s290 = sshll.u32 %s3, 4
          %s291 = int_to_ptr.hbm [resolvable:$true] %s290
          %s292 = sshll.u32 [#allocation8], 4
          %s293 = int_to_ptr.vmem [resolvable:$true] %s292
          %298 = dma.hbm_to_vmem [thread:$0]  %s291, 8192, %s293, [#allocation9], 128, 128, 8
        $region24: #{tpu_custom_call.1} parent=11 // pred_fallthru
          _
        // Predicated region
        $region25: #{tpu_custom_call.1} parent=11 // pred_check
          %p299 = pneg %p134
        $region26: #{tpu_custom_call.1} parent=11 // pred_check_branch
          %301 = sbr.rel (%p299) target = $region28
        $region27: #{tpu_custom_call.1} parent=11 // pred_region
          _
        $region28: #{tpu_custom_call.1} parent=11 // pred_fallthru
          _
        // Predicated region
        $region29: #{tpu_custom_call.1} parent=11 // pred_check
          %p302 = pneg %p155
        $region30: #{tpu_custom_call.1} parent=11 // pred_check_branch
          %304 = sbr.rel (%p302) target = $region32
        $region31: #{tpu_custom_call.1} parent=11 // pred_region
          %306 = vsyncadd [#allocation9], 0
          %s307 = sshll.u32 %s5, 4
          %s308 = int_to_ptr.hbm [resolvable:$true] %s307
          %s309 = sshll.u32 [#allocation10], 4
          %s310 = int_to_ptr.vmem [resolvable:$true] %s309
          %315 = dma.hbm_to_vmem [thread:$0]  %s308, 2048, %s310, [#allocation9], 64, 64, 4
        $region32: #{tpu_custom_call.1} parent=11 // pred_fallthru
          _
        // Predicated region
        $region33: #{tpu_custom_call.1} parent=11 // pred_check
          %p316 = pneg %p176
        $region34: #{tpu_custom_call.1} parent=11 // pred_check_branch
          %318 = sbr.rel (%p316) target = $region36
        $region35: #{tpu_custom_call.1} parent=11 // pred_region
          _
        $region36: #{tpu_custom_call.1} parent=11 // pred_fallthru
          _
        // Predicated region
        $region37: #{tpu_custom_call.1} parent=11 // pred_check
          %p319 = pneg %p197
        $region38: #{tpu_custom_call.1} parent=11 // pred_check_branch
          %321 = sbr.rel (%p319) target = $region40
        $region39: #{tpu_custom_call.1} parent=11 // pred_region
          %323 = vsyncadd [#allocation12], 0
          %s324 = sshll.u32 %s7, 4
          %s325 = int_to_ptr.hbm [resolvable:$true] %s324
          %s326 = sshll.u32 [#allocation11], 4
          %s327 = int_to_ptr.vmem [resolvable:$true] %s326
          %332 = dma.hbm_to_vmem [thread:$0]  %s325, 1024, %s327, [#allocation12], 64, 64, 4
        $region40: #{tpu_custom_call.1} parent=11 // pred_fallthru
          _
        // Predicated region
        $region41: #{tpu_custom_call.1} parent=11 // pred_check
          %p333 = pneg %p218
        $region42: #{tpu_custom_call.1} parent=11 // pred_check_branch
          %335 = sbr.rel (%p333) target = $region44
        $region43: #{tpu_custom_call.1} parent=11 // pred_region
          _
        $region44: #{tpu_custom_call.1} parent=11 // pred_fallthru
          _
      $region12: #{tpu_custom_call.1} parent=5 // pred_fallthru
        _
      %p336 = scmp.lt.s32.totalorder %s24, 2
      // Predicated region
      $region45: #{tpu_custom_call.1} parent=5 // pred_check
        %p337 = pneg %p336
      $region46: #{tpu_custom_call.1} parent=5 // pred_check_branch
        %339 = sbr.rel (%p337) target = $region48
      $region47: #{tpu_custom_call.1} parent=5 // pred_region
        // Predicated region
        $region49: #{tpu_custom_call.1} parent=47 // pred_check
          %p340 = pneg %p44
        $region50: #{tpu_custom_call.1} parent=47 // pred_check_branch
          %342 = sbr.rel (%p340) target = $region52
        $region51: #{tpu_custom_call.1} parent=47 // pred_region
          %s343 = sand.u32 %s34, 1
          %s344 = scalar_lea.sflag [#allocation3], %s343
          %s345 = sand.u32 %s34, 1
          %s346 = smul.addr %s345, 16
          %s347 = scalar_lea.vmem [#allocation2], %s346
          %s348 = smul.u32 2, %s24
          %350 = vsyncadd %s344, 0
          %s351 = smul.addr %s348, 2
          %s352 = smul.addr %s351, 4
          %s353 = scalar_lea.hbm %s0, %s352
          %s354 = sshll.u32 %s353, 4
          %s355 = int_to_ptr.hbm [resolvable:$true] %s354
          %s356 = sshll.u32 %s347, 4
          %s357 = int_to_ptr.vmem [resolvable:$true] %s356
          %362 = dma.hbm_to_vmem [thread:$0]  %s355, 256, %s357, %s344, 128, 128, 8
        $region52: #{tpu_custom_call.1} parent=47 // pred_fallthru
          _
      $region48: #{tpu_custom_call.1} parent=5 // pred_fallthru
        _
      %p363 = scmp.le.s32.totalorder 1, %s24
      %p364 = scmp.lt.s32.totalorder %s24, 3
      %p365 = pnand %p363, %p364
      %p366 = pneg %p365
      // Predicated region
      $region53: #{tpu_custom_call.1} parent=5 // pred_check
        _
      $region54: #{tpu_custom_call.1} parent=5 // pred_check_branch
        %368 = sbr.rel (%p365) target = $region56
      $region55: #{tpu_custom_call.1} parent=5 // pred_region
        %s369 = ssub.s32 %s24, 1
        %s370 = sand.u32 %s37, 1
        %s371 = scalar_lea.sflag [#allocation3], %s370
        %s372 = sand.u32 %s37, 1
        %s373 = smul.addr %s372, 16
        %s374 = scalar_lea.vmem [#allocation2], %s373
        // Predicated region
        $region57: #{tpu_custom_call.1} parent=55 // pred_check
          %p375 = pneg %p50
        $region58: #{tpu_custom_call.1} parent=55 // pred_check_branch
          %377 = sbr.rel (%p375) target = $region60
        $region59: #{tpu_custom_call.1} parent=55 // pred_region
          %379 = dma.done %s371, 256
        $region60: #{tpu_custom_call.1} parent=55 // pred_fallthru
          _
        // Predicated region
        $region61: #{tpu_custom_call.1} parent=55 // pred_check
          %p380 = pneg %p71
        $region62: #{tpu_custom_call.1} parent=55 // pred_check_branch
          %382 = sbr.rel (%p380) target = $region64
        $region63: #{tpu_custom_call.1} parent=55 // pred_region
          %384 = dma.done [#allocation6], 8192
        $region64: #{tpu_custom_call.1} parent=55 // pred_fallthru
          _
        // Predicated region
        $region65: #{tpu_custom_call.1} parent=55 // pred_check
          %p385 = pneg %p92
        $region66: #{tpu_custom_call.1} parent=55 // pred_check_branch
          %387 = sbr.rel (%p385) target = $region68
        $region67: #{tpu_custom_call.1} parent=55 // pred_region
          %389 = dma.done [#allocation6], 64
        $region68: #{tpu_custom_call.1} parent=55 // pred_fallthru
          _
        // Predicated region
        $region69: #{tpu_custom_call.1} parent=55 // pred_check
          %p390 = pneg %p113
        $region70: #{tpu_custom_call.1} parent=55 // pred_check_branch
          %392 = sbr.rel (%p390) target = $region72
        $region71: #{tpu_custom_call.1} parent=55 // pred_region
          %394 = dma.done [#allocation9], 8192
        $region72: #{tpu_custom_call.1} parent=55 // pred_fallthru
          _
        // Predicated region
        $region73: #{tpu_custom_call.1} parent=55 // pred_check
          %p395 = pneg %p155
        $region74: #{tpu_custom_call.1} parent=55 // pred_check_branch
          %397 = sbr.rel (%p395) target = $region76
        $region75: #{tpu_custom_call.1} parent=55 // pred_region
          %399 = dma.done [#allocation9], 2048
        $region76: #{tpu_custom_call.1} parent=55 // pred_fallthru
          _
        // Predicated region
        $region77: #{tpu_custom_call.1} parent=55 // pred_check
          %p400 = pneg %p197
        $region78: #{tpu_custom_call.1} parent=55 // pred_check_branch
          %402 = sbr.rel (%p400) target = $region80
        $region79: #{tpu_custom_call.1} parent=55 // pred_region
          %404 = dma.done [#allocation12], 1024
        $region80: #{tpu_custom_call.1} parent=55 // pred_fallthru
          _
        %s405 = sand.u32 %s37, 1
        %s406 = scalar_lea.sflag [#allocation3], %s405
        %s407 = sand.u32 %s37, 1
        %s408 = smul.addr %s407, 16
        %s409 = scalar_lea.vmem [#allocation2], %s408
        %p410 = pneg %p50
        %p411 = pneg %p47
        %p412 = pneg %p71
        %p413 = pneg %p68
        %p414 = pneg %p92
        %p415 = pneg %p89
        %p416 = pneg %p113
        %p417 = pneg %p110
        %p418 = pneg %p134
        %p419 = pneg %p131
        %p420 = pneg %p155
        %p421 = pneg %p152
        %p422 = pneg %p176
        %p423 = pneg %p173
        %p424 = pneg %p197
        %p425 = pneg %p194
        %p426 = pneg %p218
        %p427 = pneg %p215
        %p428 = pneg %p244
        %p429 = pneg %p241
        %s430 = sand.u32 %s231, 1
        %s431 = scalar_lea.sflag [#allocation4], %s430
        %s432 = sand.u32 %s231, 1
        %s433 = smul.addr %s432, 8
        %s434 = scalar_lea.vmem [#allocation13], %s433
        %s435 = smul.u32 2, %s29
        %s436 = smul.u32 2, %s29
        %v437 = vld [vmem:[#allocation7] sm:$0xf]
        %v438 = vld [vmem:[%s374] sm:$0xff]
        %v439 = vld [vmem:[%s374 + $0x8] sm:$0xff]
        %v440 = vld [vmem:[#allocation5] sm:$0xff]
        %v441 = vld [vmem:[#allocation5 + $0x8] sm:$0xff]
        %v442 = vld [vmem:[#allocation5 + $0x10] sm:$0xff]
        %v443 = vld [vmem:[#allocation5 + $0x18] sm:$0xff]
        %v444 = vld [vmem:[#allocation5 + $0x20] sm:$0xff]
        %v445 = vld [vmem:[#allocation5 + $0x28] sm:$0xff]
        %v446 = vld [vmem:[#allocation5 + $0x30] sm:$0xff]
        %v447 = vld [vmem:[#allocation5 + $0x38] sm:$0xff]
        %v448 = vld [vmem:[#allocation5 + $0x40] sm:$0xff]
        %v449 = vld [vmem:[#allocation5 + $0x48] sm:$0xff]
        %v450 = vld [vmem:[#allocation5 + $0x50] sm:$0xff]
        %v451 = vld [vmem:[#allocation5 + $0x58] sm:$0xff]
        %v452 = vld [vmem:[#allocation5 + $0x60] sm:$0xff]
        %v453 = vld [vmem:[#allocation5 + $0x68] sm:$0xff]
        %v454 = vld [vmem:[#allocation5 + $0x70] sm:$0xff]
        %v455 = vld [vmem:[#allocation5 + $0x78] sm:$0xff]
        %v456 = vld [vmem:[#allocation5 + $0x80] sm:$0xff]
        %v457 = vld [vmem:[#allocation5 + $0x88] sm:$0xff]
        %v458 = vld [vmem:[#allocation5 + $0x90] sm:$0xff]
        %v459 = vld [vmem:[#allocation5 + $0x98] sm:$0xff]
        %v460 = vld [vmem:[#allocation5 + $0xa0] sm:$0xff]
        %v461 = vld [vmem:[#allocation5 + $0xa8] sm:$0xff]
        %v462 = vld [vmem:[#allocation5 + $0xb0] sm:$0xff]
        %v463 = vld [vmem:[#allocation5 + $0xb8] sm:$0xff]
        %v464 = vld [vmem:[#allocation5 + $0xc0] sm:$0xff]
        %v465 = vld [vmem:[#allocation5 + $0xc8] sm:$0xff]
        %v466 = vld [vmem:[#allocation5 + $0xd0] sm:$0xff]
        %v467 = vld [vmem:[#allocation5 + $0xd8] sm:$0xff]
        %v468 = vld [vmem:[#allocation5 + $0xe0] sm:$0xff]
        %v469 = vld [vmem:[#allocation5 + $0xe8] sm:$0xff]
        %v470 = vld [vmem:[#allocation5 + $0xf0] sm:$0xff]
        %v471 = vld [vmem:[#allocation5 + $0xf8] sm:$0xff]
        %v472 = vld [vmem:[#allocation5 + $0x100] sm:$0xff]
        %v473 = vld [vmem:[#allocation5 + $0x108] sm:$0xff]
        %v474 = vld [vmem:[#allocation5 + $0x110] sm:$0xff]
        %v475 = vld [vmem:[#allocation5 + $0x118] sm:$0xff]
        %v476 = vld [vmem:[#allocation5 + $0x120] sm:$0xff]
        %v477 = vld [vmem:[#allocation5 + $0x128] sm:$0xff]
        %v478 = vld [vmem:[#allocation5 + $0x130] sm:$0xff]
        %v479 = vld [vmem:[#allocation5 + $0x138] sm:$0xff]
        %v480 = vld [vmem:[#allocation5 + $0x140] sm:$0xff]
        %v481 = vld [vmem:[#allocation5 + $0x148] sm:$0xff]
        %v482 = vld [vmem:[#allocation5 + $0x150] sm:$0xff]
        %v483 = vld [vmem:[#allocation5 + $0x158] sm:$0xff]
        %v484 = vld [vmem:[#allocation5 + $0x160] sm:$0xff]
        %v485 = vld [vmem:[#allocation5 + $0x168] sm:$0xff]
        %v486 = vld [vmem:[#allocation5 + $0x170] sm:$0xff]
        %v487 = vld [vmem:[#allocation5 + $0x178] sm:$0xff]
        %v488 = vld [vmem:[#allocation5 + $0x180] sm:$0xff]
        %v489 = vld [vmem:[#allocation5 + $0x188] sm:$0xff]
        %v490 = vld [vmem:[#allocation5 + $0x190] sm:$0xff]
        %v491 = vld [vmem:[#allocation5 + $0x198] sm:$0xff]
        %v492 = vld [vmem:[#allocation5 + $0x1a0] sm:$0xff]
        %v493 = vld [vmem:[#allocation5 + $0x1a8] sm:$0xff]
        %v494 = vld [vmem:[#allocation5 + $0x1b0] sm:$0xff]
        %v495 = vld [vmem:[#allocation5 + $0x1b8] sm:$0xff]
        %v496 = vld [vmem:[#allocation5 + $0x1c0] sm:$0xff]
        %v497 = vld [vmem:[#allocation5 + $0x1c8] sm:$0xff]
        %v498 = vld [vmem:[#allocation5 + $0x1d0] sm:$0xff]
        %v499 = vld [vmem:[#allocation5 + $0x1d8] sm:$0xff]
        %v500 = vld [vmem:[#allocation5 + $0x1e0] sm:$0xff]
        %v501 = vld [vmem:[#allocation5 + $0x1e8] sm:$0xff]
        %v502 = vld [vmem:[#allocation5 + $0x1f0] sm:$0xff]
        %v503 = vld [vmem:[#allocation5 + $0x1f8] sm:$0xff]
        %v506 = vunpack.c.l.b16 %v438
        %v507 = vunpack.c.h.b16 %v438
        %v508 = vunpack.c.l.b16 %v439
        %v509 = vunpack.c.h.b16 %v439
        %v510 = vpack.c.b16 %v508, %v506
        %v511 = vpack.c.b16 %v509, %v507
        %v578 = vunpack.c.l.b16 %v440
        %v579 = vunpack.c.h.b16 %v440
        %v580 = vunpack.c.l.b16 %v441
        %v581 = vunpack.c.h.b16 %v441
        %v582 = vunpack.c.l.b16 %v442
        %v583 = vunpack.c.h.b16 %v442
        %v584 = vunpack.c.l.b16 %v443
        %v585 = vunpack.c.h.b16 %v443
        %v586 = vunpack.c.l.b16 %v444
        %v587 = vunpack.c.h.b16 %v444
        %v588 = vunpack.c.l.b16 %v445
        %v589 = vunpack.c.h.b16 %v445
        %v590 = vunpack.c.l.b16 %v446
        %v591 = vunpack.c.h.b16 %v446
        %v592 = vunpack.c.l.b16 %v447
        %v593 = vunpack.c.h.b16 %v447
        %v594 = vunpack.c.l.b16 %v448
        %v595 = vunpack.c.h.b16 %v448
        %v596 = vunpack.c.l.b16 %v449
        %v597 = vunpack.c.h.b16 %v449
        %v598 = vunpack.c.l.b16 %v450
        %v599 = vunpack.c.h.b16 %v450
        %v600 = vunpack.c.l.b16 %v451
        %v601 = vunpack.c.h.b16 %v451
        %v602 = vunpack.c.l.b16 %v452
        %v603 = vunpack.c.h.b16 %v452
        %v604 = vunpack.c.l.b16 %v453
        %v605 = vunpack.c.h.b16 %v453
        %v606 = vunpack.c.l.b16 %v454
        %v607 = vunpack.c.h.b16 %v454
        %v608 = vunpack.c.l.b16 %v455
        %v609 = vunpack.c.h.b16 %v455
        %v610 = vunpack.c.l.b16 %v456
        %v611 = vunpack.c.h.b16 %v456
        %v612 = vunpack.c.l.b16 %v457
        %v613 = vunpack.c.h.b16 %v457
        %v614 = vunpack.c.l.b16 %v458
        %v615 = vunpack.c.h.b16 %v458
        %v616 = vunpack.c.l.b16 %v459
        %v617 = vunpack.c.h.b16 %v459
        %v618 = vunpack.c.l.b16 %v460
        %v619 = vunpack.c.h.b16 %v460
        %v620 = vunpack.c.l.b16 %v461
        %v621 = vunpack.c.h.b16 %v461
        %v622 = vunpack.c.l.b16 %v462
        %v623 = vunpack.c.h.b16 %v462
        %v624 = vunpack.c.l.b16 %v463
        %v625 = vunpack.c.h.b16 %v463
        %v626 = vunpack.c.l.b16 %v464
        %v627 = vunpack.c.h.b16 %v464
        %v628 = vunpack.c.l.b16 %v465
        %v629 = vunpack.c.h.b16 %v465
        %v630 = vunpack.c.l.b16 %v466
        %v631 = vunpack.c.h.b16 %v466
        %v632 = vunpack.c.l.b16 %v467
        %v633 = vunpack.c.h.b16 %v467
        %v634 = vunpack.c.l.b16 %v468
        %v635 = vunpack.c.h.b16 %v468
        %v636 = vunpack.c.l.b16 %v469
        %v637 = vunpack.c.h.b16 %v469
        %v638 = vunpack.c.l.b16 %v470
        %v639 = vunpack.c.h.b16 %v470
        %v640 = vunpack.c.l.b16 %v471
        %v641 = vunpack.c.h.b16 %v471
        %v642 = vunpack.c.l.b16 %v472
        %v643 = vunpack.c.h.b16 %v472
        %v644 = vunpack.c.l.b16 %v473
        %v645 = vunpack.c.h.b16 %v473
        %v646 = vunpack.c.l.b16 %v474
        %v647 = vunpack.c.h.b16 %v474
        %v648 = vunpack.c.l.b16 %v475
        %v649 = vunpack.c.h.b16 %v475
        %v650 = vunpack.c.l.b16 %v476
        %v651 = vunpack.c.h.b16 %v476
        %v652 = vunpack.c.l.b16 %v477
        %v653 = vunpack.c.h.b16 %v477
        %v654 = vunpack.c.l.b16 %v478
        %v655 = vunpack.c.h.b16 %v478
        %v656 = vunpack.c.l.b16 %v479
        %v657 = vunpack.c.h.b16 %v479
        %v658 = vunpack.c.l.b16 %v480
        %v659 = vunpack.c.h.b16 %v480
        %v660 = vunpack.c.l.b16 %v481
        %v661 = vunpack.c.h.b16 %v481
        %v662 = vunpack.c.l.b16 %v482
        %v663 = vunpack.c.h.b16 %v482
        %v664 = vunpack.c.l.b16 %v483
        %v665 = vunpack.c.h.b16 %v483
        %v666 = vunpack.c.l.b16 %v484
        %v667 = vunpack.c.h.b16 %v484
        %v668 = vunpack.c.l.b16 %v485
        %v669 = vunpack.c.h.b16 %v485
        %v670 = vunpack.c.l.b16 %v486
        %v671 = vunpack.c.h.b16 %v486
        %v672 = vunpack.c.l.b16 %v487
        %v673 = vunpack.c.h.b16 %v487
        %v674 = vunpack.c.l.b16 %v488
        %v675 = vunpack.c.h.b16 %v488
        %v676 = vunpack.c.l.b16 %v489
        %v677 = vunpack.c.h.b16 %v489
        %v678 = vunpack.c.l.b16 %v490
        %v679 = vunpack.c.h.b16 %v490
        %v680 = vunpack.c.l.b16 %v491
        %v681 = vunpack.c.h.b16 %v491
        %v682 = vunpack.c.l.b16 %v492
        %v683 = vunpack.c.h.b16 %v492
        %v684 = vunpack.c.l.b16 %v493
        %v685 = vunpack.c.h.b16 %v493
        %v686 = vunpack.c.l.b16 %v494
        %v687 = vunpack.c.h.b16 %v494
        %v688 = vunpack.c.l.b16 %v495
        %v689 = vunpack.c.h.b16 %v495
        %v690 = vunpack.c.l.b16 %v496
        %v691 = vunpack.c.h.b16 %v496
        %v692 = vunpack.c.l.b16 %v497
        %v693 = vunpack.c.h.b16 %v497
        %v694 = vunpack.c.l.b16 %v498
        %v695 = vunpack.c.h.b16 %v498
        %v696 = vunpack.c.l.b16 %v499
        %v697 = vunpack.c.h.b16 %v499
        %v698 = vunpack.c.l.b16 %v500
        %v699 = vunpack.c.h.b16 %v500
        %v700 = vunpack.c.l.b16 %v501
        %v701 = vunpack.c.h.b16 %v501
        %v702 = vunpack.c.l.b16 %v502
        %v703 = vunpack.c.h.b16 %v502
        %v704 = vunpack.c.l.b16 %v503
        %v705 = vunpack.c.h.b16 %v503
        %v706 = vpack.c.b16 %v582, %v578
        %v707 = vpack.c.b16 %v583, %v579
        %v708 = vpack.c.b16 %v584, %v580
        %v709 = vpack.c.b16 %v585, %v581
        %v710 = vpack.c.b16 %v590, %v586
        %v711 = vpack.c.b16 %v591, %v587
        %v712 = vpack.c.b16 %v592, %v588
        %v713 = vpack.c.b16 %v593, %v589
        %v714 = vpack.c.b16 %v598, %v594
        %v715 = vpack.c.b16 %v599, %v595
        %v716 = vpack.c.b16 %v600, %v596
        %v717 = vpack.c.b16 %v601, %v597
        %v718 = vpack.c.b16 %v606, %v602
        %v719 = vpack.c.b16 %v607, %v603
        %v720 = vpack.c.b16 %v608, %v604
        %v721 = vpack.c.b16 %v609, %v605
        %v722 = vpack.c.b16 %v614, %v610
        %v723 = vpack.c.b16 %v615, %v611
        %v724 = vpack.c.b16 %v616, %v612
        %v725 = vpack.c.b16 %v617, %v613
        %v726 = vpack.c.b16 %v622, %v618
        %v727 = vpack.c.b16 %v623, %v619
        %v728 = vpack.c.b16 %v624, %v620
        %v729 = vpack.c.b16 %v625, %v621
        %v730 = vpack.c.b16 %v630, %v626
        %v731 = vpack.c.b16 %v631, %v627
        %v732 = vpack.c.b16 %v632, %v628
        %v733 = vpack.c.b16 %v633, %v629
        %v734 = vpack.c.b16 %v638, %v634
        %v735 = vpack.c.b16 %v639, %v635
        %v736 = vpack.c.b16 %v640, %v636
        %v737 = vpack.c.b16 %v641, %v637
        %v738 = vpack.c.b16 %v646, %v642
        %v739 = vpack.c.b16 %v647, %v643
        %v740 = vpack.c.b16 %v648, %v644
        %v741 = vpack.c.b16 %v649, %v645
        %v742 = vpack.c.b16 %v654, %v650
        %v743 = vpack.c.b16 %v655, %v651
        %v744 = vpack.c.b16 %v656, %v652
        %v745 = vpack.c.b16 %v657, %v653
        %v746 = vpack.c.b16 %v662, %v658
        %v747 = vpack.c.b16 %v663, %v659
        %v748 = vpack.c.b16 %v664, %v660
        %v749 = vpack.c.b16 %v665, %v661
        %v750 = vpack.c.b16 %v670, %v666
        %v751 = vpack.c.b16 %v671, %v667
        %v752 = vpack.c.b16 %v672, %v668
        %v753 = vpack.c.b16 %v673, %v669
        %v754 = vpack.c.b16 %v678, %v674
        %v755 = vpack.c.b16 %v679, %v675
        %v756 = vpack.c.b16 %v680, %v676
        %v757 = vpack.c.b16 %v681, %v677
        %v758 = vpack.c.b16 %v686, %v682
        %v759 = vpack.c.b16 %v687, %v683
        %v760 = vpack.c.b16 %v688, %v684
        %v761 = vpack.c.b16 %v689, %v685
        %v762 = vpack.c.b16 %v694, %v690
        %v763 = vpack.c.b16 %v695, %v691
        %v764 = vpack.c.b16 %v696, %v692
        %v765 = vpack.c.b16 %v697, %v693
        %v766 = vpack.c.b16 %v702, %v698
        %v767 = vpack.c.b16 %v703, %v699
        %v768 = vpack.c.b16 %v704, %v700
        %v769 = vpack.c.b16 %v705, %v701
        %834 = vmatpush.bf16.msra.mxu0 %v734
        %835 = vmatpush.bf16.msra.mxu0 %v730
        %836 = vmatpush.bf16.msra.mxu0 %v726
        %837 = vmatpush.bf16.msra.mxu0 %v722
        %838 = vmatpush.bf16.msra.mxu0 %v718
        %839 = vmatpush.bf16.msra.mxu0 %v714
        %840 = vmatpush.bf16.msra.mxu0 %v710
        %841 = vmatpush.bf16.msra.mxu0 %v706
        %842 = vmatmul.bf16.gmra.mxu0 %v510
        %v843 = vpop.f32.mrf.mxu0
        %v844 = vadd.f32 0.0, %v843
        %v845 = vpop.f32.mrf.mxu0
        %v846 = vadd.f32 0.0, %v845
        %847 = vdwg.mxu0
        %848 = vmatpush.bf16.msra.mxu0 %v766
        %849 = vmatpush.bf16.msra.mxu0 %v762
        %850 = vmatpush.bf16.msra.mxu0 %v758
        %851 = vmatpush.bf16.msra.mxu0 %v754
        %852 = vmatpush.bf16.msra.mxu0 %v750
        %853 = vmatpush.bf16.msra.mxu0 %v746
        %854 = vmatpush.bf16.msra.mxu0 %v742
        %855 = vmatpush.bf16.msra.mxu0 %v738
        %856 = vmatmul.bf16.gmra.mxu0 %v511
        %v857 = vpop.f32.mrf.mxu0
        %v858 = vadd.f32 %v844, %v857
        %v859 = vpop.f32.mrf.mxu0
        %v860 = vadd.f32 %v846, %v859
        %861 = vdwg.mxu0
        %862 = vmatpush.bf16.msra.mxu0 %v735
        %863 = vmatpush.bf16.msra.mxu0 %v731
        %864 = vmatpush.bf16.msra.mxu0 %v727
        %865 = vmatpush.bf16.msra.mxu0 %v723
        %866 = vmatpush.bf16.msra.mxu0 %v719
        %867 = vmatpush.bf16.msra.mxu0 %v715
        %868 = vmatpush.bf16.msra.mxu0 %v711
        %869 = vmatpush.bf16.msra.mxu0 %v707
        %870 = vmatmul.bf16.gmra.mxu0 %v510
        %v871 = vpop.f32.mrf.mxu0
        %v872 = vadd.f32 0.0, %v871
        %v873 = vpop.f32.mrf.mxu0
        %v874 = vadd.f32 0.0, %v873
        %875 = vdwg.mxu0
        %876 = vmatpush.bf16.msra.mxu0 %v767
        %877 = vmatpush.bf16.msra.mxu0 %v763
        %878 = vmatpush.bf16.msra.mxu0 %v759
        %879 = vmatpush.bf16.msra.mxu0 %v755
        %880 = vmatpush.bf16.msra.mxu0 %v751
        %881 = vmatpush.bf16.msra.mxu0 %v747
        %882 = vmatpush.bf16.msra.mxu0 %v743
        %883 = vmatpush.bf16.msra.mxu0 %v739
        %884 = vmatmul.bf16.gmra.mxu0 %v511
        %v885 = vpop.f32.mrf.mxu0
        %v886 = vadd.f32 %v872, %v885
        %v887 = vpop.f32.mrf.mxu0
        %v888 = vadd.f32 %v874, %v887
        %889 = vdwg.mxu0
        %890 = vmatpush.bf16.msra.mxu0 %v736
        %891 = vmatpush.bf16.msra.mxu0 %v732
        %892 = vmatpush.bf16.msra.mxu0 %v728
        %893 = vmatpush.bf16.msra.mxu0 %v724
        %894 = vmatpush.bf16.msra.mxu0 %v720
        %895 = vmatpush.bf16.msra.mxu0 %v716
        %896 = vmatpush.bf16.msra.mxu0 %v712
        %897 = vmatpush.bf16.msra.mxu0 %v708
        %898 = vmatmul.bf16.gmra.mxu0 %v510
        %v899 = vpop.f32.mrf.mxu0
        %v900 = vadd.f32 0.0, %v899
        %v901 = vpop.f32.mrf.mxu0
        %v902 = vadd.f32 0.0, %v901
        %903 = vdwg.mxu0
        %904 = vmatpush.bf16.msra.mxu0 %v768
        %905 = vmatpush.bf16.msra.mxu0 %v764
        %906 = vmatpush.bf16.msra.mxu0 %v760
        %907 = vmatpush.bf16.msra.mxu0 %v756
        %908 = vmatpush.bf16.msra.mxu0 %v752
        %909 = vmatpush.bf16.msra.mxu0 %v748
        %910 = vmatpush.bf16.msra.mxu0 %v744
        %911 = vmatpush.bf16.msra.mxu0 %v740
        %912 = vmatmul.bf16.gmra.mxu0 %v511
        %v913 = vpop.f32.mrf.mxu0
        %v914 = vadd.f32 %v900, %v913
        %v915 = vpop.f32.mrf.mxu0
        %v916 = vadd.f32 %v902, %v915
        %917 = vdwg.mxu0
        %918 = vmatpush.bf16.msra.mxu0 %v737
        %919 = vmatpush.bf16.msra.mxu0 %v733
        %920 = vmatpush.bf16.msra.mxu0 %v729
        %921 = vmatpush.bf16.msra.mxu0 %v725
        %922 = vmatpush.bf16.msra.mxu0 %v721
        %923 = vmatpush.bf16.msra.mxu0 %v717
        %924 = vmatpush.bf16.msra.mxu0 %v713
        %925 = vmatpush.bf16.msra.mxu0 %v709
        %926 = vmatmul.bf16.gmra.mxu0 %v510
        %v927 = vpop.f32.mrf.mxu0
        %v928 = vadd.f32 0.0, %v927
        %v929 = vpop.f32.mrf.mxu0
        %v930 = vadd.f32 0.0, %v929
        %931 = vdwg.mxu0
        %932 = vmatpush.bf16.msra.mxu0 %v769
        %933 = vmatpush.bf16.msra.mxu0 %v765
        %934 = vmatpush.bf16.msra.mxu0 %v761
        %935 = vmatpush.bf16.msra.mxu0 %v757
        %936 = vmatpush.bf16.msra.mxu0 %v753
        %937 = vmatpush.bf16.msra.mxu0 %v749
        %938 = vmatpush.bf16.msra.mxu0 %v745
        %939 = vmatpush.bf16.msra.mxu0 %v741
        %940 = vmatmul.bf16.gmra.mxu0 %v511
        %v941 = vpop.f32.mrf.mxu0
        %v942 = vadd.f32 %v928, %v941
        %v943 = vpop.f32.mrf.mxu0
        %v944 = vadd.f32 %v930, %v943
        %945 = vdwg.mxu0
        %v947 = vperm.slane %v437, 0
        %v948 = vperm.slane %v437, 1
        %v949 = vperm.slane %v437, 2
        %v950 = vperm.slane %v437, 3
        %v955 = vadd.f32 %v947, %v858
        %v956 = vadd.f32 %v948, %v886
        %v957 = vadd.f32 %v949, %v914
        %v958 = vadd.f32 %v950, %v942
        %v959 = vadd.f32 %v947, %v860
        %v960 = vadd.f32 %v948, %v888
        %v961 = vadd.f32 %v949, %v916
        %v962 = vadd.f32 %v950, %v944
        %v963 = vmax.f32 %v955, 0.0
        %v964 = vmax.f32 %v956, 0.0
        %v965 = vmax.f32 %v957, 0.0
        %v966 = vmax.f32 %v958, 0.0
        %v967 = vmax.f32 %v959, 0.0
        %v968 = vmax.f32 %v960, 0.0
        %v969 = vmax.f32 %v961, 0.0
        %v970 = vmax.f32 %v962, 0.0
        %v971 = vpack.c.bf16 %v967, %v963
        %v972 = vpack.c.bf16 %v968, %v964
        %v973 = vpack.c.bf16 %v969, %v965
        %v974 = vpack.c.bf16 %v970, %v966
        %v975 = vld [vmem:[#allocation8] sm:$0xff]
        %v976 = vld [vmem:[#allocation8 + $0x8] sm:$0xff]
        %v977 = vld [vmem:[#allocation8 + $0x10] sm:$0xff]
        %v978 = vld [vmem:[#allocation8 + $0x18] sm:$0xff]
        %v979 = vld [vmem:[#allocation8 + $0x20] sm:$0xff]
        %v980 = vld [vmem:[#allocation8 + $0x28] sm:$0xff]
        %v981 = vld [vmem:[#allocation8 + $0x30] sm:$0xff]
        %v982 = vld [vmem:[#allocation8 + $0x38] sm:$0xff]
        %v983 = vld [vmem:[#allocation8 + $0x40] sm:$0xff]
        %v984 = vld [vmem:[#allocation8 + $0x48] sm:$0xff]
        %v985 = vld [vmem:[#allocation8 + $0x50] sm:$0xff]
        %v986 = vld [vmem:[#allocation8 + $0x58] sm:$0xff]
        %v987 = vld [vmem:[#allocation8 + $0x60] sm:$0xff]
        %v988 = vld [vmem:[#allocation8 + $0x68] sm:$0xff]
        %v989 = vld [vmem:[#allocation8 + $0x70] sm:$0xff]
        %v990 = vld [vmem:[#allocation8 + $0x78] sm:$0xff]
        %v991 = vld [vmem:[#allocation8 + $0x80] sm:$0xff]
        %v992 = vld [vmem:[#allocation8 + $0x88] sm:$0xff]
        %v993 = vld [vmem:[#allocation8 + $0x90] sm:$0xff]
        %v994 = vld [vmem:[#allocation8 + $0x98] sm:$0xff]
        %v995 = vld [vmem:[#allocation8 + $0xa0] sm:$0xff]
        %v996 = vld [vmem:[#allocation8 + $0xa8] sm:$0xff]
        %v997 = vld [vmem:[#allocation8 + $0xb0] sm:$0xff]
        %v998 = vld [vmem:[#allocation8 + $0xb8] sm:$0xff]
        %v999 = vld [vmem:[#allocation8 + $0xc0] sm:$0xff]
        %v1000 = vld [vmem:[#allocation8 + $0xc8] sm:$0xff]
        %v1001 = vld [vmem:[#allocation8 + $0xd0] sm:$0xff]
        %v1002 = vld [vmem:[#allocation8 + $0xd8] sm:$0xff]
        %v1003 = vld [vmem:[#allocation8 + $0xe0] sm:$0xff]
        %v1004 = vld [vmem:[#allocation8 + $0xe8] sm:$0xff]
        %v1005 = vld [vmem:[#allocation8 + $0xf0] sm:$0xff]
        %v1006 = vld [vmem:[#allocation8 + $0xf8] sm:$0xff]
        %v1007 = vld [vmem:[#allocation8 + $0x100] sm:$0xff]
        %v1008 = vld [vmem:[#allocation8 + $0x108] sm:$0xff]
        %v1009 = vld [vmem:[#allocation8 + $0x110] sm:$0xff]
        %v1010 = vld [vmem:[#allocation8 + $0x118] sm:$0xff]
        %v1011 = vld [vmem:[#allocation8 + $0x120] sm:$0xff]
        %v1012 = vld [vmem:[#allocation8 + $0x128] sm:$0xff]
        %v1013 = vld [vmem:[#allocation8 + $0x130] sm:$0xff]
        %v1014 = vld [vmem:[#allocation8 + $0x138] sm:$0xff]
        %v1015 = vld [vmem:[#allocation8 + $0x140] sm:$0xff]
        %v1016 = vld [vmem:[#allocation8 + $0x148] sm:$0xff]
        %v1017 = vld [vmem:[#allocation8 + $0x150] sm:$0xff]
        %v1018 = vld [vmem:[#allocation8 + $0x158] sm:$0xff]
        %v1019 = vld [vmem:[#allocation8 + $0x160] sm:$0xff]
        %v1020 = vld [vmem:[#allocation8 + $0x168] sm:$0xff]
        %v1021 = vld [vmem:[#allocation8 + $0x170] sm:$0xff]
        %v1022 = vld [vmem:[#allocation8 + $0x178] sm:$0xff]
        %v1023 = vld [vmem:[#allocation8 + $0x180] sm:$0xff]
        %v1024 = vld [vmem:[#allocation8 + $0x188] sm:$0xff]
        %v1025 = vld [vmem:[#allocation8 + $0x190] sm:$0xff]
        %v1026 = vld [vmem:[#allocation8 + $0x198] sm:$0xff]
        %v1027 = vld [vmem:[#allocation8 + $0x1a0] sm:$0xff]
        %v1028 = vld [vmem:[#allocation8 + $0x1a8] sm:$0xff]
        %v1029 = vld [vmem:[#allocation8 + $0x1b0] sm:$0xff]
        %v1030 = vld [vmem:[#allocation8 + $0x1b8] sm:$0xff]
        %v1031 = vld [vmem:[#allocation8 + $0x1c0] sm:$0xff]
        %v1032 = vld [vmem:[#allocation8 + $0x1c8] sm:$0xff]
        %v1033 = vld [vmem:[#allocation8 + $0x1d0] sm:$0xff]
        %v1034 = vld [vmem:[#allocation8 + $0x1d8] sm:$0xff]
        %v1035 = vld [vmem:[#allocation8 + $0x1e0] sm:$0xff]
        %v1036 = vld [vmem:[#allocation8 + $0x1e8] sm:$0xff]
        %v1037 = vld [vmem:[#allocation8 + $0x1f0] sm:$0xff]
        %v1038 = vld [vmem:[#allocation8 + $0x1f8] sm:$0xff]
        %v1039 = vld [vmem:[%s4] sm:$0x3]
        %v1041 = vperm.slane %v1039, 0
        %v1042 = vperm.slane %v1039, 1
        %v1109 = vunpack.c.l.b16 %v975
        %v1110 = vunpack.c.h.b16 %v975
        %v1111 = vunpack.c.l.b16 %v976
        %v1112 = vunpack.c.h.b16 %v976
        %v1113 = vunpack.c.l.b16 %v977
        %v1114 = vunpack.c.h.b16 %v977
        %v1115 = vunpack.c.l.b16 %v978
        %v1116 = vunpack.c.h.b16 %v978
        %v1117 = vunpack.c.l.b16 %v979
        %v1118 = vunpack.c.h.b16 %v979
        %v1119 = vunpack.c.l.b16 %v980
        %v1120 = vunpack.c.h.b16 %v980
        %v1121 = vunpack.c.l.b16 %v981
        %v1122 = vunpack.c.h.b16 %v981
        %v1123 = vunpack.c.l.b16 %v982
        %v1124 = vunpack.c.h.b16 %v982
        %v1125 = vunpack.c.l.b16 %v983
        %v1126 = vunpack.c.h.b16 %v983
        %v1127 = vunpack.c.l.b16 %v984
        %v1128 = vunpack.c.h.b16 %v984
        %v1129 = vunpack.c.l.b16 %v985
        %v1130 = vunpack.c.h.b16 %v985
        %v1131 = vunpack.c.l.b16 %v986
        %v1132 = vunpack.c.h.b16 %v986
        %v1133 = vunpack.c.l.b16 %v987
        %v1134 = vunpack.c.h.b16 %v987
        %v1135 = vunpack.c.l.b16 %v988
        %v1136 = vunpack.c.h.b16 %v988
        %v1137 = vunpack.c.l.b16 %v989
        %v1138 = vunpack.c.h.b16 %v989
        %v1139 = vunpack.c.l.b16 %v990
        %v1140 = vunpack.c.h.b16 %v990
        %v1141 = vunpack.c.l.b16 %v991
        %v1142 = vunpack.c.h.b16 %v991
        %v1143 = vunpack.c.l.b16 %v992
        %v1144 = vunpack.c.h.b16 %v992
        %v1145 = vunpack.c.l.b16 %v993
        %v1146 = vunpack.c.h.b16 %v993
        %v1147 = vunpack.c.l.b16 %v994
        %v1148 = vunpack.c.h.b16 %v994
        %v1149 = vunpack.c.l.b16 %v995
        %v1150 = vunpack.c.h.b16 %v995
        %v1151 = vunpack.c.l.b16 %v996
        %v1152 = vunpack.c.h.b16 %v996
        %v1153 = vunpack.c.l.b16 %v997
        %v1154 = vunpack.c.h.b16 %v997
        %v1155 = vunpack.c.l.b16 %v998
        %v1156 = vunpack.c.h.b16 %v998
        %v1157 = vunpack.c.l.b16 %v999
        %v1158 = vunpack.c.h.b16 %v999
        %v1159 = vunpack.c.l.b16 %v1000
        %v1160 = vunpack.c.h.b16 %v1000
        %v1161 = vunpack.c.l.b16 %v1001
        %v1162 = vunpack.c.h.b16 %v1001
        %v1163 = vunpack.c.l.b16 %v1002
        %v1164 = vunpack.c.h.b16 %v1002
        %v1165 = vunpack.c.l.b16 %v1003
        %v1166 = vunpack.c.h.b16 %v1003
        %v1167 = vunpack.c.l.b16 %v1004
        %v1168 = vunpack.c.h.b16 %v1004
        %v1169 = vunpack.c.l.b16 %v1005
        %v1170 = vunpack.c.h.b16 %v1005
        %v1171 = vunpack.c.l.b16 %v1006
        %v1172 = vunpack.c.h.b16 %v1006
        %v1173 = vunpack.c.l.b16 %v1007
        %v1174 = vunpack.c.h.b16 %v1007
        %v1175 = vunpack.c.l.b16 %v1008
        %v1176 = vunpack.c.h.b16 %v1008
        %v1177 = vunpack.c.l.b16 %v1009
        %v1178 = vunpack.c.h.b16 %v1009
        %v1179 = vunpack.c.l.b16 %v1010
        %v1180 = vunpack.c.h.b16 %v1010
        %v1181 = vunpack.c.l.b16 %v1011
        %v1182 = vunpack.c.h.b16 %v1011
        %v1183 = vunpack.c.l.b16 %v1012
        %v1184 = vunpack.c.h.b16 %v1012
        %v1185 = vunpack.c.l.b16 %v1013
        %v1186 = vunpack.c.h.b16 %v1013
        %v1187 = vunpack.c.l.b16 %v1014
        %v1188 = vunpack.c.h.b16 %v1014
        %v1189 = vunpack.c.l.b16 %v1015
        %v1190 = vunpack.c.h.b16 %v1015
        %v1191 = vunpack.c.l.b16 %v1016
        %v1192 = vunpack.c.h.b16 %v1016
        %v1193 = vunpack.c.l.b16 %v1017
        %v1194 = vunpack.c.h.b16 %v1017
        %v1195 = vunpack.c.l.b16 %v1018
        %v1196 = vunpack.c.h.b16 %v1018
        %v1197 = vunpack.c.l.b16 %v1019
        %v1198 = vunpack.c.h.b16 %v1019
        %v1199 = vunpack.c.l.b16 %v1020
        %v1200 = vunpack.c.h.b16 %v1020
        %v1201 = vunpack.c.l.b16 %v1021
        %v1202 = vunpack.c.h.b16 %v1021
        %v1203 = vunpack.c.l.b16 %v1022
        %v1204 = vunpack.c.h.b16 %v1022
        %v1205 = vunpack.c.l.b16 %v1023
        %v1206 = vunpack.c.h.b16 %v1023
        %v1207 = vunpack.c.l.b16 %v1024
        %v1208 = vunpack.c.h.b16 %v1024
        %v1209 = vunpack.c.l.b16 %v1025
        %v1210 = vunpack.c.h.b16 %v1025
        %v1211 = vunpack.c.l.b16 %v1026
        %v1212 = vunpack.c.h.b16 %v1026
        %v1213 = vunpack.c.l.b16 %v1027
        %v1214 = vunpack.c.h.b16 %v1027
        %v1215 = vunpack.c.l.b16 %v1028
        %v1216 = vunpack.c.h.b16 %v1028
        %v1217 = vunpack.c.l.b16 %v1029
        %v1218 = vunpack.c.h.b16 %v1029
        %v1219 = vunpack.c.l.b16 %v1030
        %v1220 = vunpack.c.h.b16 %v1030
        %v1221 = vunpack.c.l.b16 %v1031
        %v1222 = vunpack.c.h.b16 %v1031
        %v1223 = vunpack.c.l.b16 %v1032
        %v1224 = vunpack.c.h.b16 %v1032
        %v1225 = vunpack.c.l.b16 %v1033
        %v1226 = vunpack.c.h.b16 %v1033
        %v1227 = vunpack.c.l.b16 %v1034
        %v1228 = vunpack.c.h.b16 %v1034
        %v1229 = vunpack.c.l.b16 %v1035
        %v1230 = vunpack.c.h.b16 %v1035
        %v1231 = vunpack.c.l.b16 %v1036
        %v1232 = vunpack.c.h.b16 %v1036
        %v1233 = vunpack.c.l.b16 %v1037
        %v1234 = vunpack.c.h.b16 %v1037
        %v1235 = vunpack.c.l.b16 %v1038
        %v1236 = vunpack.c.h.b16 %v1038
        %v1237 = vpack.c.b16 %v1111, %v1109
        %v1238 = vpack.c.b16 %v1112, %v1110
        %v1239 = vpack.c.b16 %v1115, %v1113
        %v1240 = vpack.c.b16 %v1116, %v1114
        %v1241 = vpack.c.b16 %v1119, %v1117
        %v1242 = vpack.c.b16 %v1120, %v1118
        %v1243 = vpack.c.b16 %v1123, %v1121
        %v1244 = vpack.c.b16 %v1124, %v1122
        %v1245 = vpack.c.b16 %v1127, %v1125
        %v1246 = vpack.c.b16 %v1128, %v1126
        %v1247 = vpack.c.b16 %v1131, %v1129
        %v1248 = vpack.c.b16 %v1132, %v1130
        %v1249 = vpack.c.b16 %v1135, %v1133
        %v1250 = vpack.c.b16 %v1136, %v1134
        %v1251 = vpack.c.b16 %v1139, %v1137
        %v1252 = vpack.c.b16 %v1140, %v1138
        %v1253 = vpack.c.b16 %v1143, %v1141
        %v1254 = vpack.c.b16 %v1144, %v1142
        %v1255 = vpack.c.b16 %v1147, %v1145
        %v1256 = vpack.c.b16 %v1148, %v1146
        %v1257 = vpack.c.b16 %v1151, %v1149
        %v1258 = vpack.c.b16 %v1152, %v1150
        %v1259 = vpack.c.b16 %v1155, %v1153
        %v1260 = vpack.c.b16 %v1156, %v1154
        %v1261 = vpack.c.b16 %v1159, %v1157
        %v1262 = vpack.c.b16 %v1160, %v1158
        %v1263 = vpack.c.b16 %v1163, %v1161
        %v1264 = vpack.c.b16 %v1164, %v1162
        %v1265 = vpack.c.b16 %v1167, %v1165
        %v1266 = vpack.c.b16 %v1168, %v1166
        %v1267 = vpack.c.b16 %v1171, %v1169
        %v1268 = vpack.c.b16 %v1172, %v1170
        %v1269 = vpack.c.b16 %v1175, %v1173
        %v1270 = vpack.c.b16 %v1176, %v1174
        %v1271 = vpack.c.b16 %v1179, %v1177
        %v1272 = vpack.c.b16 %v1180, %v1178
        %v1273 = vpack.c.b16 %v1183, %v1181
        %v1274 = vpack.c.b16 %v1184, %v1182
        %v1275 = vpack.c.b16 %v1187, %v1185
        %v1276 = vpack.c.b16 %v1188, %v1186
        %v1277 = vpack.c.b16 %v1191, %v1189
        %v1278 = vpack.c.b16 %v1192, %v1190
        %v1279 = vpack.c.b16 %v1195, %v1193
        %v1280 = vpack.c.b16 %v1196, %v1194
        %v1281 = vpack.c.b16 %v1199, %v1197
        %v1282 = vpack.c.b16 %v1200, %v1198
        %v1283 = vpack.c.b16 %v1203, %v1201
        %v1284 = vpack.c.b16 %v1204, %v1202
        %v1285 = vpack.c.b16 %v1207, %v1205
        %v1286 = vpack.c.b16 %v1208, %v1206
        %v1287 = vpack.c.b16 %v1211, %v1209
        %v1288 = vpack.c.b16 %v1212, %v1210
        %v1289 = vpack.c.b16 %v1215, %v1213
        %v1290 = vpack.c.b16 %v1216, %v1214
        %v1291 = vpack.c.b16 %v1219, %v1217
        %v1292 = vpack.c.b16 %v1220, %v1218
        %v1293 = vpack.c.b16 %v1223, %v1221
        %v1294 = vpack.c.b16 %v1224, %v1222
        %v1295 = vpack.c.b16 %v1227, %v1225
        %v1296 = vpack.c.b16 %v1228, %v1226
        %v1297 = vpack.c.b16 %v1231, %v1229
        %v1298 = vpack.c.b16 %v1232, %v1230
        %v1299 = vpack.c.b16 %v1235, %v1233
        %v1300 = vpack.c.b16 %v1236, %v1234
        %1365 = vmatpush.bf16.msra.mxu0 %v1251
        %1366 = vmatpush.bf16.msra.mxu0 %v1249
        %1367 = vmatpush.bf16.msra.mxu0 %v1247
        %1368 = vmatpush.bf16.msra.mxu0 %v1245
        %1369 = vmatpush.bf16.msra.mxu0 %v1243
        %1370 = vmatpush.bf16.msra.mxu0 %v1241
        %1371 = vmatpush.bf16.msra.mxu0 %v1239
        %1372 = vmatpush.bf16.msra.mxu0 %v1237
        %1373 = vmatmul.bf16.gmra.mxu0 %v971
        %v1374 = vpop.f32.mrf.mxu0
        %v1375 = vadd.f32 %v1041, %v1374
        %v1376 = vpop.f32.mrf.mxu0
        %v1377 = vadd.f32 %v1041, %v1376
        %1378 = vdwg.mxu0
        %1379 = vmatpush.bf16.msra.mxu0 %v1267
        %1380 = vmatpush.bf16.msra.mxu0 %v1265
        %1381 = vmatpush.bf16.msra.mxu0 %v1263
        %1382 = vmatpush.bf16.msra.mxu0 %v1261
        %1383 = vmatpush.bf16.msra.mxu0 %v1259
        %1384 = vmatpush.bf16.msra.mxu0 %v1257
        %1385 = vmatpush.bf16.msra.mxu0 %v1255
        %1386 = vmatpush.bf16.msra.mxu0 %v1253
        %1387 = vmatmul.bf16.gmra.mxu0 %v972
        %v1388 = vpop.f32.mrf.mxu0
        %v1389 = vadd.f32 %v1375, %v1388
        %v1390 = vpop.f32.mrf.mxu0
        %v1391 = vadd.f32 %v1377, %v1390
        %1392 = vdwg.mxu0
        %1393 = vmatpush.bf16.msra.mxu0 %v1283
        %1394 = vmatpush.bf16.msra.mxu0 %v1281
        %1395 = vmatpush.bf16.msra.mxu0 %v1279
        %1396 = vmatpush.bf16.msra.mxu0 %v1277
        %1397 = vmatpush.bf16.msra.mxu0 %v1275
        %1398 = vmatpush.bf16.msra.mxu0 %v1273
        %1399 = vmatpush.bf16.msra.mxu0 %v1271
        %1400 = vmatpush.bf16.msra.mxu0 %v1269
        %1401 = vmatmul.bf16.gmra.mxu0 %v973
        %v1402 = vpop.f32.mrf.mxu0
        %v1403 = vadd.f32 %v1389, %v1402
        %v1404 = vpop.f32.mrf.mxu0
        %v1405 = vadd.f32 %v1391, %v1404
        %1406 = vdwg.mxu0
        %1407 = vmatpush.bf16.msra.mxu0 %v1299
        %1408 = vmatpush.bf16.msra.mxu0 %v1297
        %1409 = vmatpush.bf16.msra.mxu0 %v1295
        %1410 = vmatpush.bf16.msra.mxu0 %v1293
        %1411 = vmatpush.bf16.msra.mxu0 %v1291
        %1412 = vmatpush.bf16.msra.mxu0 %v1289
        %1413 = vmatpush.bf16.msra.mxu0 %v1287
        %1414 = vmatpush.bf16.msra.mxu0 %v1285
        %1415 = vmatmul.bf16.gmra.mxu0 %v974
        %v1416 = vpop.f32.mrf.mxu0
        %v1417 = vadd.f32 %v1403, %v1416
        %v1418 = vpop.f32.mrf.mxu0
        %v1419 = vadd.f32 %v1405, %v1418
        %1420 = vdwg.mxu0
        %1421 = vmatpush.bf16.msra.mxu0 %v1252
        %1422 = vmatpush.bf16.msra.mxu0 %v1250
        %1423 = vmatpush.bf16.msra.mxu0 %v1248
        %1424 = vmatpush.bf16.msra.mxu0 %v1246
        %1425 = vmatpush.bf16.msra.mxu0 %v1244
        %1426 = vmatpush.bf16.msra.mxu0 %v1242
        %1427 = vmatpush.bf16.msra.mxu0 %v1240
        %1428 = vmatpush.bf16.msra.mxu0 %v1238
        %1429 = vmatmul.bf16.gmra.mxu0 %v971
        %v1430 = vpop.f32.mrf.mxu0
        %v1431 = vadd.f32 %v1042, %v1430
        %v1432 = vpop.f32.mrf.mxu0
        %v1433 = vadd.f32 %v1042, %v1432
        %1434 = vdwg.mxu0
        %1435 = vmatpush.bf16.msra.mxu0 %v1268
        %1436 = vmatpush.bf16.msra.mxu0 %v1266
        %1437 = vmatpush.bf16.msra.mxu0 %v1264
        %1438 = vmatpush.bf16.msra.mxu0 %v1262
        %1439 = vmatpush.bf16.msra.mxu0 %v1260
        %1440 = vmatpush.bf16.msra.mxu0 %v1258
        %1441 = vmatpush.bf16.msra.mxu0 %v1256
        %1442 = vmatpush.bf16.msra.mxu0 %v1254
        %1443 = vmatmul.bf16.gmra.mxu0 %v972
        %v1444 = vpop.f32.mrf.mxu0
        %v1445 = vadd.f32 %v1431, %v1444
        %v1446 = vpop.f32.mrf.mxu0
        %v1447 = vadd.f32 %v1433, %v1446
        %1448 = vdwg.mxu0
        %1449 = vmatpush.bf16.msra.mxu0 %v1284
        %1450 = vmatpush.bf16.msra.mxu0 %v1282
        %1451 = vmatpush.bf16.msra.mxu0 %v1280
        %1452 = vmatpush.bf16.msra.mxu0 %v1278
        %1453 = vmatpush.bf16.msra.mxu0 %v1276
        %1454 = vmatpush.bf16.msra.mxu0 %v1274
        %1455 = vmatpush.bf16.msra.mxu0 %v1272
        %1456 = vmatpush.bf16.msra.mxu0 %v1270
        %1457 = vmatmul.bf16.gmra.mxu0 %v973
        %v1458 = vpop.f32.mrf.mxu0
        %v1459 = vadd.f32 %v1445, %v1458
        %v1460 = vpop.f32.mrf.mxu0
        %v1461 = vadd.f32 %v1447, %v1460
        %1462 = vdwg.mxu0
        %1463 = vmatpush.bf16.msra.mxu0 %v1300
        %1464 = vmatpush.bf16.msra.mxu0 %v1298
        %1465 = vmatpush.bf16.msra.mxu0 %v1296
        %1466 = vmatpush.bf16.msra.mxu0 %v1294
        %1467 = vmatpush.bf16.msra.mxu0 %v1292
        %1468 = vmatpush.bf16.msra.mxu0 %v1290
        %1469 = vmatpush.bf16.msra.mxu0 %v1288
        %1470 = vmatpush.bf16.msra.mxu0 %v1286
        %1471 = vmatmul.bf16.gmra.mxu0 %v974
        %v1472 = vpop.f32.mrf.mxu0
        %v1473 = vadd.f32 %v1459, %v1472
        %v1474 = vpop.f32.mrf.mxu0
        %v1475 = vadd.f32 %v1461, %v1474
        %1476 = vdwg.mxu0
        %v1477 = vmax.f32 %v1417, 0.0
        %v1478 = vmax.f32 %v1473, 0.0
        %v1479 = vmax.f32 %v1419, 0.0
        %v1480 = vmax.f32 %v1475, 0.0
        %v1481 = vpack.c.bf16 %v1479, %v1477
        %v1482 = vpack.c.bf16 %v1480, %v1478
        %v1483 = vld [vmem:[#allocation10] sm:$0xf]
        %v1484 = vld [vmem:[#allocation10 + $0x4] sm:$0xf]
        %v1485 = vld [vmem:[#allocation10 + $0x8] sm:$0xf]
        %v1486 = vld [vmem:[#allocation10 + $0xc] sm:$0xf]
        %v1487 = vld [vmem:[#allocation10 + $0x10] sm:$0xf]
        %v1488 = vld [vmem:[#allocation10 + $0x14] sm:$0xf]
        %v1489 = vld [vmem:[#allocation10 + $0x18] sm:$0xf]
        %v1490 = vld [vmem:[#allocation10 + $0x1c] sm:$0xf]
        %v1491 = vld [vmem:[#allocation10 + $0x20] sm:$0xf]
        %v1492 = vld [vmem:[#allocation10 + $0x24] sm:$0xf]
        %v1493 = vld [vmem:[#allocation10 + $0x28] sm:$0xf]
        %v1494 = vld [vmem:[#allocation10 + $0x2c] sm:$0xf]
        %v1495 = vld [vmem:[#allocation10 + $0x30] sm:$0xf]
        %v1496 = vld [vmem:[#allocation10 + $0x34] sm:$0xf]
        %v1497 = vld [vmem:[#allocation10 + $0x38] sm:$0xf]
        %v1498 = vld [vmem:[#allocation10 + $0x3c] sm:$0xf]
        %v1499 = vld [vmem:[#allocation10 + $0x40] sm:$0xf]
        %v1500 = vld [vmem:[#allocation10 + $0x44] sm:$0xf]
        %v1501 = vld [vmem:[#allocation10 + $0x48] sm:$0xf]
        %v1502 = vld [vmem:[#allocation10 + $0x4c] sm:$0xf]
        %v1503 = vld [vmem:[#allocation10 + $0x50] sm:$0xf]
        %v1504 = vld [vmem:[#allocation10 + $0x54] sm:$0xf]
        %v1505 = vld [vmem:[#allocation10 + $0x58] sm:$0xf]
        %v1506 = vld [vmem:[#allocation10 + $0x5c] sm:$0xf]
        %v1507 = vld [vmem:[#allocation10 + $0x60] sm:$0xf]
        %v1508 = vld [vmem:[#allocation10 + $0x64] sm:$0xf]
        %v1509 = vld [vmem:[#allocation10 + $0x68] sm:$0xf]
        %v1510 = vld [vmem:[#allocation10 + $0x6c] sm:$0xf]
        %v1511 = vld [vmem:[#allocation10 + $0x70] sm:$0xf]
        %v1512 = vld [vmem:[#allocation10 + $0x74] sm:$0xf]
        %v1513 = vld [vmem:[#allocation10 + $0x78] sm:$0xf]
        %v1514 = vld [vmem:[#allocation10 + $0x7c] sm:$0xf]
        %v1515 = vld [vmem:[%s6] sm:$0x1]
        %v1517 = vperm.slane %v1515, 0
        %v1551 = vunpack.c.l.b16 %v1483
        %v1552 = vunpack.c.l.b16 %v1484
        %v1553 = vunpack.c.l.b16 %v1485
        %v1554 = vunpack.c.l.b16 %v1486
        %v1555 = vunpack.c.l.b16 %v1487
        %v1556 = vunpack.c.l.b16 %v1488
        %v1557 = vunpack.c.l.b16 %v1489
        %v1558 = vunpack.c.l.b16 %v1490
        %v1559 = vunpack.c.l.b16 %v1491
        %v1560 = vunpack.c.l.b16 %v1492
        %v1561 = vunpack.c.l.b16 %v1493
        %v1562 = vunpack.c.l.b16 %v1494
        %v1563 = vunpack.c.l.b16 %v1495
        %v1564 = vunpack.c.l.b16 %v1496
        %v1565 = vunpack.c.l.b16 %v1497
        %v1566 = vunpack.c.l.b16 %v1498
        %v1567 = vunpack.c.l.b16 %v1499
        %v1568 = vunpack.c.l.b16 %v1500
        %v1569 = vunpack.c.l.b16 %v1501
        %v1570 = vunpack.c.l.b16 %v1502
        %v1571 = vunpack.c.l.b16 %v1503
        %v1572 = vunpack.c.l.b16 %v1504
        %v1573 = vunpack.c.l.b16 %v1505
        %v1574 = vunpack.c.l.b16 %v1506
        %v1575 = vunpack.c.l.b16 %v1507
        %v1576 = vunpack.c.l.b16 %v1508
        %v1577 = vunpack.c.l.b16 %v1509
        %v1578 = vunpack.c.l.b16 %v1510
        %v1579 = vunpack.c.l.b16 %v1511
        %v1580 = vunpack.c.l.b16 %v1512
        %v1581 = vunpack.c.l.b16 %v1513
        %v1582 = vunpack.c.l.b16 %v1514
        %v1583 = vpack.c.b16 %v1552, %v1551
        %v1584 = vpack.c.b16 %v1554, %v1553
        %v1585 = vpack.c.b16 %v1556, %v1555
        %v1586 = vpack.c.b16 %v1558, %v1557
        %v1587 = vpack.c.b16 %v1560, %v1559
        %v1588 = vpack.c.b16 %v1562, %v1561
        %v1589 = vpack.c.b16 %v1564, %v1563
        %v1590 = vpack.c.b16 %v1566, %v1565
        %v1591 = vpack.c.b16 %v1568, %v1567
        %v1592 = vpack.c.b16 %v1570, %v1569
        %v1593 = vpack.c.b16 %v1572, %v1571
        %v1594 = vpack.c.b16 %v1574, %v1573
        %v1595 = vpack.c.b16 %v1576, %v1575
        %v1596 = vpack.c.b16 %v1578, %v1577
        %v1597 = vpack.c.b16 %v1580, %v1579
        %v1598 = vpack.c.b16 %v1582, %v1581
        %1615 = vmatpush.bf16.msra.mxu0 %v1590
        %1616 = vmatpush.bf16.msra.mxu0 %v1589
        %1617 = vmatpush.bf16.msra.mxu0 %v1588
        %1618 = vmatpush.bf16.msra.mxu0 %v1587
        %1619 = vmatpush.bf16.msra.mxu0 %v1586
        %1620 = vmatpush.bf16.msra.mxu0 %v1585
        %1621 = vmatpush.bf16.msra.mxu0 %v1584
        %1622 = vmatpush.bf16.msra.mxu0 %v1583
        %1623 = vmatmul.bf16.gmra.mxu0 %v1481
        %v1624 = vpop.f32.mrf.mxu0
        %v1625 = vadd.f32 %v1517, %v1624
        %v1626 = vpop.f32.mrf.mxu0
        %v1627 = vadd.f32 %v1517, %v1626
        %1628 = vdwg.mxu0
        %1629 = vmatpush.bf16.msra.mxu0 %v1598
        %1630 = vmatpush.bf16.msra.mxu0 %v1597
        %1631 = vmatpush.bf16.msra.mxu0 %v1596
        %1632 = vmatpush.bf16.msra.mxu0 %v1595
        %1633 = vmatpush.bf16.msra.mxu0 %v1594
        %1634 = vmatpush.bf16.msra.mxu0 %v1593
        %1635 = vmatpush.bf16.msra.mxu0 %v1592
        %1636 = vmatpush.bf16.msra.mxu0 %v1591
        %1637 = vmatmul.bf16.gmra.mxu0 %v1482
        %v1638 = vpop.f32.mrf.mxu0
        %v1639 = vadd.f32 %v1625, %v1638
        %v1640 = vpop.f32.mrf.mxu0
        %v1641 = vadd.f32 %v1627, %v1640
        %1642 = vdwg.mxu0
        %v1643 = vmax.f32 %v1639, 0.0
        %v1644 = vmax.f32 %v1641, 0.0
        %v1645 = vpack.c.bf16 %v1644, %v1643
        %v1646 = vld [vmem:[#allocation11] sm:$0xf]
        %v1647 = vld [vmem:[#allocation11 + $0x4] sm:$0xf]
        %v1648 = vld [vmem:[#allocation11 + $0x8] sm:$0xf]
        %v1649 = vld [vmem:[#allocation11 + $0xc] sm:$0xf]
        %v1650 = vld [vmem:[#allocation11 + $0x10] sm:$0xf]
        %v1651 = vld [vmem:[#allocation11 + $0x14] sm:$0xf]
        %v1652 = vld [vmem:[#allocation11 + $0x18] sm:$0xf]
        %v1653 = vld [vmem:[#allocation11 + $0x1c] sm:$0xf]
        %v1654 = vld [vmem:[#allocation11 + $0x20] sm:$0xf]
        %v1655 = vld [vmem:[#allocation11 + $0x24] sm:$0xf]
        %v1656 = vld [vmem:[#allocation11 + $0x28] sm:$0xf]
        %v1657 = vld [vmem:[#allocation11 + $0x2c] sm:$0xf]
        %v1658 = vld [vmem:[#allocation11 + $0x30] sm:$0xf]
        %v1659 = vld [vmem:[#allocation11 + $0x34] sm:$0xf]
        %v1660 = vld [vmem:[#allocation11 + $0x38] sm:$0xf]
        %v1661 = vld [vmem:[#allocation11 + $0x3c] sm:$0xf]
        %v1662 = vld [vmem:[%s8] sm:$0x1]
        %v1664 = vperm.slane %v1662, 0
        %v1682 = vunpack.c.l.b16 %v1646
        %v1683 = vunpack.c.l.b16 %v1647
        %v1684 = vunpack.c.l.b16 %v1648
        %v1685 = vunpack.c.l.b16 %v1649
        %v1686 = vunpack.c.l.b16 %v1650
        %v1687 = vunpack.c.l.b16 %v1651
        %v1688 = vunpack.c.l.b16 %v1652
        %v1689 = vunpack.c.l.b16 %v1653
        %v1690 = vunpack.c.l.b16 %v1654
        %v1691 = vunpack.c.l.b16 %v1655
        %v1692 = vunpack.c.l.b16 %v1656
        %v1693 = vunpack.c.l.b16 %v1657
        %v1694 = vunpack.c.l.b16 %v1658
        %v1695 = vunpack.c.l.b16 %v1659
        %v1696 = vunpack.c.l.b16 %v1660
        %v1697 = vunpack.c.l.b16 %v1661
        %v1698 = vpack.c.b16 %v1683, %v1682
        %v1699 = vpack.c.b16 %v1685, %v1684
        %v1700 = vpack.c.b16 %v1687, %v1686
        %v1701 = vpack.c.b16 %v1689, %v1688
        %v1702 = vpack.c.b16 %v1691, %v1690
        %v1703 = vpack.c.b16 %v1693, %v1692
        %v1704 = vpack.c.b16 %v1695, %v1694
        %v1705 = vpack.c.b16 %v1697, %v1696
        %1714 = vmatpush.bf16.msra.mxu0 %v1705
        %1715 = vmatpush.bf16.msra.mxu0 %v1704
        %1716 = vmatpush.bf16.msra.mxu0 %v1703
        %1717 = vmatpush.bf16.msra.mxu0 %v1702
        %1718 = vmatpush.bf16.msra.mxu0 %v1701
        %1719 = vmatpush.bf16.msra.mxu0 %v1700
        %1720 = vmatpush.bf16.msra.mxu0 %v1699
        %1721 = vmatpush.bf16.msra.mxu0 %v1698
        %1722 = vmatmul.bf16.gmra.mxu0 %v1645
        %v1723 = vpop.f32.mrf.mxu0
        %v1724 = vadd.f32 %v1664, %v1723
        %v1725 = vpop.f32.mrf.mxu0
        %v1726 = vadd.f32 %v1664, %v1725
        %1727 = vdwg.mxu0
        %v1728 = vpack.c.bf16 %v1724, %v1724
        %v1729 = vpack.c.bf16 %v1726, %v1726
        %1730 = vst [vmem:[%s434] sm:$0xf] %v1728
        %1731 = vst [vmem:[%s434 + $0x4] sm:$0xf] %v1729
        %s1732 = sand.u32 %s231, 1
        %s1733 = scalar_lea.sflag [#allocation4], %s1732
        %s1734 = sand.u32 %s231, 1
        %s1735 = smul.addr %s1734, 8
        %s1736 = scalar_lea.vmem [#allocation13], %s1735
        // Predicated region
        $region81: #{tpu_custom_call.1} parent=55 // pred_check
          %p1737 = pneg %p241
        $region82: #{tpu_custom_call.1} parent=55 // pred_check_branch
          %1739 = sbr.rel (%p1737) target = $region84
        $region83: #{tpu_custom_call.1} parent=55 // pred_region
          %s1740 = smul.u32 2, %s29
          %1742 = vsyncadd %s1733, 0
          %s1743 = smul.addr %s1740, 4
          %s1744 = scalar_lea.hbm %s9, %s1743
          %s1745 = sshll.u32 %s1736, 4
          %s1746 = int_to_ptr.vmem [resolvable:$true] %s1745
          %s1747 = sshll.u32 %s1744, 4
          %s1748 = int_to_ptr.hbm [resolvable:$true] %s1747
          %1753 = dma.vmem_to_hbm [thread:$0]  %s1746, 128, %s1748, %s1733, 64, 64, 4
        $region84: #{tpu_custom_call.1} parent=55 // pred_fallthru
          _
      $region56: #{tpu_custom_call.1} parent=5 // pred_fallthru
        _
      %p1754 = scmp.le.s32.totalorder 2, %s24
      // Predicated region
      $region85: #{tpu_custom_call.1} parent=5 // pred_check
        %p1755 = pneg %p1754
      $region86: #{tpu_custom_call.1} parent=5 // pred_check_branch
        %1757 = sbr.rel (%p1755) target = $region88
      $region87: #{tpu_custom_call.1} parent=5 // pred_region
        %s1758 = ssub.s32 %s24, 2
        // Predicated region
        $region89: #{tpu_custom_call.1} parent=87 // pred_check
          %p1759 = pneg %p247
        $region90: #{tpu_custom_call.1} parent=87 // pred_check_branch
          %1761 = sbr.rel (%p1759) target = $region92
        $region91: #{tpu_custom_call.1} parent=87 // pred_region
          %s1762 = sand.u32 %s232, 1
          %s1763 = scalar_lea.sflag [#allocation4], %s1762
          %s1764 = sand.u32 %s232, 1
          %s1765 = smul.addr %s1764, 8
          %s1766 = scalar_lea.vmem [#allocation13], %s1765
          %1768 = dma.done %s1763, 128
        $region92: #{tpu_custom_call.1} parent=87 // pred_fallthru
          _
      $region88: #{tpu_custom_call.1} parent=5 // pred_fallthru
        _
    $region6: #{tpu_custom_call.1} parent=1 // loop_footer
      %s28 = sadd.s32 1, %s24
    $region7: #{tpu_custom_call.1} parent=1 // loop_footer_branch
      %23 = sbr.rel target = $region3
    $region8: #{tpu_custom_call.1} parent=1 // loop_exit
      _
    %1769 = vsyncpa [#allocation3], 1
    %s1770 = scalar_lea.sflag [#allocation3], 1
    %1771 = vsyncpa %s1770, 1
    %1772 = vsyncpa [#allocation6], 1
    %1773 = vsyncpa [#allocation9], 1
    %1774 = vsyncpa [#allocation12], 1
    %1775 = vsyncpa [#allocation4], 1
    %s1776 = scalar_lea.sflag [#allocation4], 1
    %1777 = vsyncpa %s1776, 1

</llo_original>
